<compile_context>
chip_gen: v5e
topology: v5e:2x2
jax: 0.10.0
libtpu: 0.0.40
codegen_flags: <defaults>
</compile_context>

<pallas_src>
import functools

import jax
import jax.numpy as jnp
from jax.experimental import pallas as pl
from jax.experimental.pallas import tpu as pltpu

LANE = 128            # TPU lane width (last-dim quantum)
MAX_DST_TILE = 1024   # parallel (dst) axis tile cap
MAX_SRC_TILE = 2048   # reduction (src) axis tile cap
MAX_EDGE_TILE = 2048  # decoder edge tile cap


# ----------------------------------------------------------------------------
# small helpers
# ----------------------------------------------------------------------------
def _round_up(n, m):
    return ((n + m - 1) // m) * m


@functools.lru_cache(maxsize=1)
def _vmem_limit_bytes():
    """Generation-aware scoped-VMEM cap: ~3/4 of physical, never above 96 MiB.
    -> ~96 MiB on v5e/v6e (128 MiB physical), ~48 MiB on v7x (64 MiB)."""
    phys = 64 * 1024 * 1024
    try:
        info = pltpu.get_tpu_info()
        phys = int(getattr(info, "vmem_capacity_bytes", phys) or phys)
    except Exception:
        pass
    return int(min(phys * 3 // 4, 96 * 1024 * 1024))


def _choose_tile(n_pad, max_tile, min_blocks=1):
    """Largest multiple-of-128 tile <= max_tile that exactly divides n_pad
    (n_pad is already a multiple of 128, so no extra padding waste).  With
    min_blocks=2 a parallel axis gets >=2 blocks when possible so both v7x
    TensorCores have work (no effect on single-TC v5e/v6e)."""
    cap = min(max_tile, n_pad)
    if min_blocks > 1 and n_pad >= min_blocks * LANE:
        cap = min(cap, n_pad // min_blocks)
    cap = max(LANE, (cap // LANE) * LANE)
    for t in range(cap, LANE - 1, -LANE):
        if n_pad % t == 0:
            return t
    return LANE


def _pad2d(x, rows, cols, dtype=None):
    if dtype is not None:
        x = x.astype(dtype)
    return jnp.pad(x, ((0, rows - x.shape[0]), (0, cols - x.shape[1])))


# ----------------------------------------------------------------------------
# Pallas kernels
# ----------------------------------------------------------------------------
def _sage_conv_kernel(a_ref, xs_ref, xd_ref, wl_ref, bl_ref, wr_ref, o_ref,
                      acc_ref, *, apply_relu):
    """Tiled SAGEConv (bipartite, mean aggregation).

    Grid = (dst_tiles, src_tiles); the src axis is the reduction:
        acc[dst_tile] += A[dst_tile, src_tile] @ x_src[src_tile]      (f32 acc)
    and on the last src tile:
        out = relu?( acc @ W_l + b_l + x_dst @ W_r )
    (lin_l has a bias, lin_r does not — matches PyG SAGEConv.)
    Note: padded dst rows end up holding relu(b_l); harmless because padded
    rows are never consumed downstream.
    """
    k = pl.program_id(1)

    @pl.when(k == 0)
    def _():
        acc_ref[...] = jnp.zeros_like(acc_ref)

    # bf16 x bf16 -> f32 accumulate on the MXU.
    acc_ref[...] += jnp.dot(a_ref[...], xs_ref[...],
                            preferred_element_type=jnp.float32)

    @pl.when(k == pl.num_programs(1) - 1)
    def _():
        out = jnp.dot(acc_ref[...].astype(jnp.bfloat16), wl_ref[...],
                      preferred_element_type=jnp.float32)
        out = out + bl_ref[...]                            # lin_l bias (f32)
        out = out + jnp.dot(xd_ref[...], wr_ref[...],      # lin_r (no bias)
                            preferred_element_type=jnp.float32)
        if apply_relu:
            out = jnp.maximum(out, 0.0)
        o_ref[...] = out.astype(o_ref.dtype)


def _edge_decoder_kernel(zu_ref, zp_ref, w1u_ref, w1p_ref, b1_ref,
                         w2_ref, b2_ref, o_ref):
    """EdgeDecoder on a tile of gathered endpoint embeddings.

      h = relu( [zu, zp] @ W1 + b1 )    (concat realized as split matmuls)
      o = h @ W2 + b2
    W2 is zero-padded to (H_pad, 128) with the real weight in lane 0, so the
    output is a lane-dense (tile_e, 128) slab of unmasked stores; lane 0
    holds the logit.  The slab is written in bf16 to halve logit writeback.
    """
    h = jnp.dot(zu_ref[...], w1u_ref[...], preferred_element_type=jnp.float32)
    h = h + jnp.dot(zp_ref[...], w1p_ref[...],
                    preferred_element_type=jnp.float32)
    h = jnp.maximum(h + b1_ref[...], 0.0)
    o = jnp.dot(h.astype(jnp.bfloat16), w2_ref[...],
                preferred_element_type=jnp.float32) + b2_ref[...]
    o_ref[...] = o.astype(o_ref.dtype)


# ----------------------------------------------------------------------------
# pallas_call wrappers
# ----------------------------------------------------------------------------
def sage_conv(adj, x_src, x_dst, w_l, b_l, w_r, *, t_dst, t_src,
              apply_relu, out_dtype=jnp.bfloat16):
    n_dst_p, n_src_p = adj.shape
    c_pad = x_src.shape[1]
    h_pad = w_l.shape[1]
    grid = (n_dst_p // t_dst, n_src_p // t_src)
    kernel = functools.partial(_sage_conv_kernel, apply_relu=apply_relu)
    return pl.pallas_call(
        kernel,
        grid=grid,
        in_specs=[
            pl.BlockSpec((t_dst, t_src), lambda i, k: (i, k)),   # A tile
            pl.BlockSpec((t_src, c_pad), lambda i, k: (k, 0)),   # x_src tile
            pl.BlockSpec((t_dst, c_pad), lambda i, k: (i, 0)),   # x_dst tile
            pl.BlockSpec((c_pad, h_pad), lambda i, k: (0, 0)),   # W_l
            pl.BlockSpec((1, h_pad), lambda i, k: (0, 0)),       # b_l
            pl.BlockSpec((c_pad, h_pad), lambda i, k: (0, 0)),   # W_r
        ],
        out_specs=pl.BlockSpec((t_dst, h_pad), lambda i, k: (i, 0)),
        out_shape=jax.ShapeDtypeStruct((n_dst_p, h_pad), out_dtype),
        scratch_shapes=[pltpu.VMEM((t_dst, c_pad), jnp.float32)],
        compiler_params=pltpu.CompilerParams(
            dimension_semantics=("parallel", "arbitrary"),
            vmem_limit_bytes=_vmem_limit_bytes()),
    )(adj, x_src, x_dst, w_l, b_l, w_r)


def edge_decoder(zu_e, zp_e, w1u, w1p, b1, w2, b2, *, t_e):
    n_e_p, h_pad = zu_e.shape
    grid = (n_e_p // t_e,)
    out = pl.pallas_call(
        _edge_decoder_kernel,
        grid=grid,
        in_specs=[
            pl.BlockSpec((t_e, h_pad), lambda i: (i, 0)),        # z_user[row]
            pl.BlockSpec((t_e, h_pad), lambda i: (i, 0)),        # z_prod[col]
            pl.BlockSpec((h_pad, h_pad), lambda i: (0, 0)),      # W1 (user half)
            pl.BlockSpec((h_pad, h_pad), lambda i: (0, 0)),      # W1 (prod half)
            pl.BlockSpec((1, h_pad), lambda i: (0, 0)),          # b1
            pl.BlockSpec((h_pad, LANE), lambda i: (0, 0)),       # W2 (lane 0)
            pl.BlockSpec((1, LANE), lambda i: (0, 0)),           # b2
        ],
        out_specs=pl.BlockSpec((t_e, LANE), lambda i: (i, 0)),
        out_shape=jax.ShapeDtypeStruct((n_e_p, LANE), jnp.bfloat16),
        compiler_params=pltpu.CompilerParams(
            dimension_semantics=("parallel",),
            vmem_limit_bytes=_vmem_limit_bytes()),
    )(zu_e, zp_e, w1u, w1p, b1, w2, b2)
    # lane 0 holds the logit; torch: z.view(-1).  Cast back to f32 outside.
    return out[:, 0].astype(jnp.float32)


# ----------------------------------------------------------------------------
# Glue: adjacency construction, parameters, full forward
# ----------------------------------------------------------------------------
def build_norm_adj(edge_index, n_src, n_dst, n_src_pad, n_dst_pad):
    """Row-normalized dense adjacency A[dst, src] (mean aggregation), built
    in one fused pass: degree segment-sum then a single scatter-add of
    1/deg[dst] into an already-padded bf16 buffer (what the kernels stream)."""
    src, dst = edge_index[0], edge_index[1]
    deg = jnp.zeros((n_dst,), jnp.float32).at[dst].add(1.0)
    inv_deg = (1.0 / jnp.maximum(deg, 1.0)).astype(jnp.bfloat16)
    a = jnp.zeros((n_dst_pad, n_src_pad), jnp.bfloat16)
    return a.at[dst, src].add(inv_deg[dst])


def _linear_params(key, fan_in, fan_out, bias=True):
    kw, kb = jax.random.split(key)
    bound = 1.0 / jnp.sqrt(float(fan_in))
    w = jax.random.uniform(kw, (fan_in, fan_out), jnp.float32, -bound, bound)
    if not bias:
        return w
    b = jax.random.uniform(kb, (1, fan_out), jnp.float32, -bound, bound)
    return w, b


def init_params(key, f_in, hidden):
    """Init at logical sizes (PyTorch semantics), zero-pad once to lane-aligned
    shapes so every kernel operand is (8,128)-tileable."""
    c_pad = _round_up(f_in, LANE)
    h_pad = _round_up(hidden, LANE)
    ks = jax.random.split(key, 10)
    p = {}
    # conv1 / conv2 duplicated per edge type by to_hetero:
    #   'u2p' : ('user', 'rates', 'products')     -> updates product nodes
    #   'p2u' : ('products', 'rev_rates', 'user') -> updates user nodes
    for li, (layer, d_in, d_in_pad) in enumerate(
            [('conv1', f_in, c_pad), ('conv2', hidden, h_pad)]):
        for ei, et in enumerate(('u2p', 'p2u')):
            base = 4 * li + 2 * ei
            w_l, b_l = _linear_params(ks[base], d_in, hidden, bias=True)
            w_r = _linear_params(ks[base + 1], d_in, hidden, bias=False)
            p[f'{layer}_{et}'] = dict(
                w_l=_pad2d(w_l, d_in_pad, h_pad, jnp.bfloat16),
                b_l=_pad2d(b_l, 1, h_pad, jnp.float32),
                w_r=_pad2d(w_r, d_in_pad, h_pad, jnp.bfloat16))
    # EdgeDecoder: lin1(2H -> H) split into user/product halves, lin2(H -> 1)
    w1, b1 = _linear_params(ks[8], 2 * hidden, hidden, bias=True)
    w2, b2 = _linear_params(ks[9], hidden, 1, bias=True)
    p['dec'] = dict(
        w1u=_pad2d(w1[:hidden], h_pad, h_pad, jnp.bfloat16),
        w1p=_pad2d(w1[hidden:], h_pad, h_pad, jnp.bfloat16),
        b1=_pad2d(b1, 1, h_pad, jnp.float32),
        w2=_pad2d(w2, h_pad, LANE, jnp.bfloat16),      # real weight in lane 0
        b2=jnp.full((1, LANE), b2[0, 0], jnp.float32))
    return p


@jax.jit
def model_forward(params, x_dict, edge_index_dict, edge_label_index):
    c_pad = params['conv1_u2p']['w_l'].shape[0]
    x_u, x_p = x_dict['user'], x_dict['products']
    n_u, n_p = x_u.shape[0], x_p.shape[0]

    # Pad node counts to the lane quantum only; tiles then divide n_pad exactly.
    n_u_pad = _round_up(n_u, LANE)
    n_p_pad = _round_up(n_p, LANE)
    t_u_dst = _choose_tile(n_u_pad, MAX_DST_TILE, min_blocks=2)
    t_p_dst = _choose_tile(n_p_pad, MAX_DST_TILE, min_blocks=2)
    t_u_src = _choose_tile(n_u_pad, MAX_SRC_TILE)
    t_p_src = _choose_tile(n_p_pad, MAX_SRC_TILE)

    xu = _pad2d(x_u, n_u_pad, c_pad, jnp.bfloat16)
    xp = _pad2d(x_p, n_p_pad, c_pad, jnp.bfloat16)

    # mean-aggregation adjacencies, (dst x src), bf16, built fused + padded
    a_u2p = build_norm_adj(edge_index_dict[('user', 'rates', 'products')],
                           n_u, n_p, n_u_pad, n_p_pad)     # (n_p_pad, n_u_pad)
    a_p2u = build_norm_adj(edge_index_dict[('products', 'rev_rates', 'user')],
                           n_p, n_u, n_p_pad, n_u_pad)     # (n_u_pad, n_p_pad)

    # ---- hetero conv1 (+ relu); aggr='sum' over the single incoming edge type
    c = params['conv1_u2p']
    h_p = sage_conv(a_u2p, xu, xp, c['w_l'], c['b_l'], c['w_r'],
                    t_dst=t_p_dst, t_src=t_u_src, apply_relu=True)
    c = params['conv1_p2u']
    h_u = sage_conv(a_p2u, xp, xu, c['w_l'], c['b_l'], c['w_r'],
                    t_dst=t_u_dst, t_src=t_p_src, apply_relu=True)

    # ---- hetero conv2 (no relu)
    c = params['conv2_u2p']
    z_p = sage_conv(a_u2p, h_u, h_p, c['w_l'], c['b_l'], c['w_r'],
                    t_dst=t_p_dst, t_src=t_u_src, apply_relu=False)
    c = params['conv2_p2u']
    z_u = sage_conv(a_p2u, h_p, h_u, c['w_l'], c['b_l'], c['w_r'],
                    t_dst=t_u_dst, t_src=t_p_src, apply_relu=False)

    # ---- EdgeDecoder: gather endpoints (glue), fused tiled MLP in Pallas
    row, col = edge_label_index[0], edge_label_index[1]
    n_e = row.shape[0]
    n_e_pad = _round_up(n_e, LANE)
    t_e = _choose_tile(n_e_pad, MAX_EDGE_TILE, min_blocks=2)
    # TODO(synk): move this gather into the decoder pallas_call via scalar
    # prefetch + manual DMA row-gather to avoid the (n_e, H) HBM tables.
    row_p = jnp.pad(row, (0, n_e_pad - n_e))
    col_p = jnp.pad(col, (0, n_e_pad - n_e))
    d = params['dec']
    out = edge_decoder(z_u[row_p], z_p[col_p],
                       d['w1u'], d['w1p'], d['b1'], d['w2'], d['b2'], t_e=t_e)
    return out[:n_e]


# ----------------------------------------------------------------------------
if __name__ == "__main__":
    key = jax.random.PRNGKey(0)
    k_x_u, k_x_p, k_e, k_lbl, k_par = jax.random.split(key, 5)

    N_USER, N_PROD, F_IN, HIDDEN = 8, 16, 16, 32
    N_EDGES, N_LABEL = 32, 8

    x_dict = {
        'user': jax.random.normal(k_x_u, (N_USER, F_IN), jnp.float32),
        'products': jax.random.normal(k_x_p, (N_PROD, F_IN), jnp.float32),
    }

    src_u = jax.random.randint(k_e, (N_EDGES,), 0, N_USER, jnp.int32)
    dst_p = jax.random.randint(jax.random.fold_in(k_e, 1), (N_EDGES,), 0,
                               N_PROD, jnp.int32)
    e_u2p = jnp.stack([src_u, dst_p])                 # ('user','rates','products')
    e_p2u = jnp.stack([dst_p, src_u])                 # reverse edge type
    edge_index_dict = {
        ('user', 'rates', 'products'): e_u2p,
        ('products', 'rev_rates', 'user'): e_p2u,
    }

    lbl_row = jax.random.randint(k_lbl, (N_LABEL,), 0, N_USER, jnp.int32)
    lbl_col = jax.random.randint(jax.random.fold_in(k_lbl, 1), (N_LABEL,), 0,
                                 N_PROD, jnp.int32)
    edge_label_index = jnp.stack([lbl_row, lbl_col])

    params = init_params(k_par, F_IN, HIDDEN)

    out = model_forward(params, x_dict, edge_index_dict, edge_label_index)
    jax.block_until_ready(out)
    assert out.shape == (N_LABEL,) and out.dtype == jnp.float32
    print("KERNEL_OK")
</pallas_src>

<mosaic_0001>
module attributes {stable_mosaic.version = 11 : i64} {
  func.func @_sage_conv_kernel(%arg0: i32, %arg1: i32, %arg2: memref<128x128xbf16, #tpu.memory_space<vmem>>, %arg3: memref<128x128xbf16, #tpu.memory_space<vmem>>, %arg4: memref<128x128xbf16, #tpu.memory_space<vmem>>, %arg5: memref<128x128xbf16, #tpu.memory_space<vmem>>, %arg6: memref<1x128xf32, #tpu.memory_space<vmem>>, %arg7: memref<128x128xbf16, #tpu.memory_space<vmem>>, %arg8: memref<128x128xbf16, #tpu.memory_space<vmem>>, %arg9: memref<128x128xf32, #tpu.memory_space<vmem>>) attributes {dimension_semantics = [#tpu.dimension_semantics<parallel>, #tpu.dimension_semantics<arbitrary>], iteration_bounds = array<i64: 1, 1>, scalar_prefetch = 0 : i64, scratch_operands = 1 : i64, tpu.core_type = #tpu.core_type<tc>, window_params = [{transform_indices = @transform_0, window_bounds = array<i64: 128, 128>}, {transform_indices = @transform_1, window_bounds = array<i64: 128, 128>}, {transform_indices = @transform_2, window_bounds = array<i64: 128, 128>}, {pipeline_mode = #tpu.pipeline_mode<synchronous>, transform_indices = @transform_3, window_bounds = array<i64: 128, 128>}, {pipeline_mode = #tpu.pipeline_mode<synchronous>, transform_indices = @transform_4, window_bounds = array<i64: 1, 128>}, {pipeline_mode = #tpu.pipeline_mode<synchronous>, transform_indices = @transform_5, window_bounds = array<i64: 128, 128>}, {transform_indices = @transform_6, window_bounds = array<i64: 128, 128>}]} {
    %c0_i32 = arith.constant 0 : i32
    %0 = arith.cmpi eq, %arg1, %c0_i32 : i32
    %1 = arith.extui %0 : i1 to i32
    %c0_i32_0 = arith.constant 0 : i32
    %2 = arith.cmpi ne, %1, %c0_i32_0 : i32
    scf.if %2 {
      %cst_10 = arith.constant 0.000000e+00 : f32
      %12 = vector.broadcast %cst_10 : f32 to vector<128x128xf32>
      %c0_11 = arith.constant 0 : index
      %c0_12 = arith.constant 0 : index
      %13 = vector.load %arg9[%c0_11, %c0_12] : memref<128x128xf32, #tpu.memory_space<vmem>>, vector<128x128xf32>
      tpu.vector_store %arg9[%c0_11, %c0_12], %12 {strides = array<i32>} : memref<128x128xf32, #tpu.memory_space<vmem>>, vector<128x128xf32>,
    } else {
    }
    %c0 = arith.constant 0 : index
    %c0_1 = arith.constant 0 : index
    %3 = vector.load %arg9[%c0, %c0_1] : memref<128x128xf32, #tpu.memory_space<vmem>>, vector<128x128xf32>
    %c0_2 = arith.constant 0 : index
    %c0_3 = arith.constant 0 : index
    %4 = vector.load %arg2[%c0_2, %c0_3] : memref<128x128xbf16, #tpu.memory_space<vmem>>, vector<128x128xbf16>
    %c0_4 = arith.constant 0 : index
    %c0_5 = arith.constant 0 : index
    %5 = vector.load %arg3[%c0_4, %c0_5] : memref<128x128xbf16, #tpu.memory_space<vmem>>, vector<128x128xbf16>
    %cst = arith.constant dense<0.000000e+00> : vector<128x128xf32>
    %6 = tpu.matmul %4, %5, %cst {dimension_numbers = #tpu.dot_dimension_numbers<[1], [0], [0], [1], [0, 0, 1, 1], [], []>} : vector<128x128xbf16>, vector<128x128xbf16>, vector<128x128xf32> -> vector<128x128xf32>
    %7 = arith.addf %3, %6 : vector<128x128xf32>
    %c0_6 = arith.constant 0 : index
    %c0_7 = arith.constant 0 : index
    %8 = vector.load %arg9[%c0_6, %c0_7] : memref<128x128xf32, #tpu.memory_space<vmem>>, vector<128x128xf32>
    tpu.vector_store %arg9[%c0_6, %c0_7], %7 {strides = array<i32>} : memref<128x128xf32, #tpu.memory_space<vmem>>, vector<128x128xf32>,
    %c0_i32_8 = arith.constant 0 : i32
    %9 = arith.cmpi eq, %arg1, %c0_i32_8 : i32
    %10 = arith.extui %9 : i1 to i32
    %c0_i32_9 = arith.constant 0 : i32
    %11 = arith.cmpi ne, %10, %c0_i32_9 : i32
    scf.if %11 {
      %c0_10 = arith.constant 0 : index
      %c0_11 = arith.constant 0 : index
      %12 = vector.load %arg9[%c0_10, %c0_11] : memref<128x128xf32, #tpu.memory_space<vmem>>, vector<128x128xf32>
      %13 = arith.truncf %12 : vector<128x128xf32> to vector<128x128xbf16>
      %c0_12 = arith.constant 0 : index
      %c0_13 = arith.constant 0 : index
      %14 = vector.load %arg5[%c0_12, %c0_13] : memref<128x128xbf16, #tpu.memory_space<vmem>>, vector<128x128xbf16>
      %cst_14 = arith.constant dense<0.000000e+00> : vector<128x128xf32>
      %15 = tpu.matmul %13, %14, %cst_14 {dimension_numbers = #tpu.dot_dimension_numbers<[1], [0], [0], [1], [0, 0, 1, 1], [], []>} : vector<128x128xbf16>, vector<128x128xbf16>, vector<128x128xf32> -> vector<128x128xf32>
      %c0_15 = arith.constant 0 : index
      %c0_16 = arith.constant 0 : index
      %16 = vector.load %arg6[%c0_15, %c0_16] : memref<1x128xf32, #tpu.memory_space<vmem>>, vector<1x128xf32>
      %17 = vector.broadcast %16 : vector<1x128xf32> to vector<128x128xf32>
      %18 = arith.addf %15, %17 : vector<128x128xf32>
      %c0_17 = arith.constant 0 : index
      %c0_18 = arith.constant 0 : index
      %19 = vector.load %arg4[%c0_17, %c0_18] : memref<128x128xbf16, #tpu.memory_space<vmem>>, vector<128x128xbf16>
      %c0_19 = arith.constant 0 : index
      %c0_20 = arith.constant 0 : index
      %20 = vector.load %arg7[%c0_19, %c0_20] : memref<128x128xbf16, #tpu.memory_space<vmem>>, vector<128x128xbf16>
      %cst_21 = arith.constant dense<0.000000e+00> : vector<128x128xf32>
      %21 = tpu.matmul %19, %20, %cst_21 {dimension_numbers = #tpu.dot_dimension_numbers<[1], [0], [0], [1], [0, 0, 1, 1], [], []>} : vector<128x128xbf16>, vector<128x128xbf16>, vector<128x128xf32> -> vector<128x128xf32>
      %22 = arith.addf %18, %21 : vector<128x128xf32>
      %23 = arith.truncf %22 : vector<128x128xf32> to vector<128x128xbf16>
      %c0_22 = arith.constant 0 : index
      %c0_23 = arith.constant 0 : index
      %24 = vector.load %arg8[%c0_22, %c0_23] : memref<128x128xbf16, #tpu.memory_space<vmem>>, vector<128x128xbf16>
      tpu.vector_store %arg8[%c0_22, %c0_23], %23 {strides = array<i32>} : memref<128x128xbf16, #tpu.memory_space<vmem>>, vector<128x128xbf16>,
    } else {
    }
    return
  }
  func.func @transform_0(%arg0: i32, %arg1: i32) -> (i32, i32) {
    %c0_i32 = arith.constant 0 : i32
    return %arg0, %arg1 : i32, i32
  }
  func.func @transform_1(%arg0: i32, %arg1: i32) -> (i32, i32) {
    %c0_i32 = arith.constant 0 : i32
    %c0_i32_0 = arith.constant 0 : i32
    return %arg1, %c0_i32 : i32, i32
  }
  func.func @transform_2(%arg0: i32, %arg1: i32) -> (i32, i32) {
    %c0_i32 = arith.constant 0 : i32
    %c0_i32_0 = arith.constant 0 : i32
    return %arg0, %c0_i32 : i32, i32
  }
  func.func @transform_3(%arg0: i32, %arg1: i32) -> (i32, i32) {
    %c0_i32 = arith.constant 0 : i32
    %c0_i32_0 = arith.constant 0 : i32
    %c0_i32_1 = arith.constant 0 : i32
    return %c0_i32, %c0_i32_0 : i32, i32
  }
  func.func @transform_4(%arg0: i32, %arg1: i32) -> (i32, i32) {
    %c0_i32 = arith.constant 0 : i32
    %c0_i32_0 = arith.constant 0 : i32
    %c0_i32_1 = arith.constant 0 : i32
    return %c0_i32, %c0_i32_0 : i32, i32
  }
  func.func @transform_5(%arg0: i32, %arg1: i32) -> (i32, i32) {
    %c0_i32 = arith.constant 0 : i32
    %c0_i32_0 = arith.constant 0 : i32
    %c0_i32_1 = arith.constant 0 : i32
    return %c0_i32, %c0_i32_0 : i32, i32
  }
  func.func @transform_6(%arg0: i32, %arg1: i32) -> (i32, i32) {
    %c0_i32 = arith.constant 0 : i32
    %c0_i32_0 = arith.constant 0 : i32
    return %arg0, %c0_i32 : i32, i32
  }
}

module attributes {stable_mosaic.version = 11 : i64} {
  func.func @_sage_conv_kernel(%arg0: i32, %arg1: i32, %arg2: memref<128x128xbf16, #tpu.memory_space<vmem>>, %arg3: memref<128x128xbf16, #tpu.memory_space<vmem>>, %arg4: memref<128x128xbf16, #tpu.memory_space<vmem>>, %arg5: memref<128x128xbf16, #tpu.memory_space<vmem>>, %arg6: memref<1x128xf32, #tpu.memory_space<vmem>>, %arg7: memref<128x128xbf16, #tpu.memory_space<vmem>>, %arg8: memref<128x128xbf16, #tpu.memory_space<vmem>>, %arg9: memref<128x128xf32, #tpu.memory_space<vmem>>) attributes {dimension_semantics = [#tpu.dimension_semantics<parallel>, #tpu.dimension_semantics<arbitrary>], iteration_bounds = array<i64: 1, 1>, scalar_prefetch = 0 : i64, scratch_operands = 1 : i64, tpu.core_type = #tpu.core_type<tc>, window_params = [{transform_indices = @transform_0, window_bounds = array<i64: 128, 128>}, {transform_indices = @transform_1, window_bounds = array<i64: 128, 128>}, {transform_indices = @transform_2, window_bounds = array<i64: 128, 128>}, {pipeline_mode = #tpu.pipeline_mode<synchronous>, transform_indices = @transform_3, window_bounds = array<i64: 128, 128>}, {pipeline_mode = #tpu.pipeline_mode<synchronous>, transform_indices = @transform_4, window_bounds = array<i64: 1, 128>}, {pipeline_mode = #tpu.pipeline_mode<synchronous>, transform_indices = @transform_5, window_bounds = array<i64: 128, 128>}, {transform_indices = @transform_6, window_bounds = array<i64: 128, 128>}]} {
    %c0_i32 = arith.constant 0 : i32
    %0 = arith.cmpi eq, %arg1, %c0_i32 : i32
    %1 = arith.extui %0 : i1 to i32
    %c0_i32_0 = arith.constant 0 : i32
    %2 = arith.cmpi ne, %1, %c0_i32_0 : i32
    scf.if %2 {
      %cst_10 = arith.constant 0.000000e+00 : f32
      %12 = vector.broadcast %cst_10 : f32 to vector<128x128xf32>
      %c0_11 = arith.constant 0 : index
      %c0_12 = arith.constant 0 : index
      %13 = vector.load %arg9[%c0_11, %c0_12] : memref<128x128xf32, #tpu.memory_space<vmem>>, vector<128x128xf32>
      tpu.vector_store %arg9[%c0_11, %c0_12], %12 {strides = array<i32>} : memref<128x128xf32, #tpu.memory_space<vmem>>, vector<128x128xf32>,
    } else {
    }
    %c0 = arith.constant 0 : index
    %c0_1 = arith.constant 0 : index
    %3 = vector.load %arg9[%c0, %c0_1] : memref<128x128xf32, #tpu.memory_space<vmem>>, vector<128x128xf32>
    %c0_2 = arith.constant 0 : index
    %c0_3 = arith.constant 0 : index
    %4 = vector.load %arg2[%c0_2, %c0_3] : memref<128x128xbf16, #tpu.memory_space<vmem>>, vector<128x128xbf16>
    %c0_4 = arith.constant 0 : index
    %c0_5 = arith.constant 0 : index
    %5 = vector.load %arg3[%c0_4, %c0_5] : memref<128x128xbf16, #tpu.memory_space<vmem>>, vector<128x128xbf16>
    %cst = arith.constant dense<0.000000e+00> : vector<128x128xf32>
    %6 = tpu.matmul %4, %5, %cst {dimension_numbers = #tpu.dot_dimension_numbers<[1], [0], [0], [1], [0, 0, 1, 1], [], []>} : vector<128x128xbf16>, vector<128x128xbf16>, vector<128x128xf32> -> vector<128x128xf32>
    %7 = arith.addf %3, %6 : vector<128x128xf32>
    %c0_6 = arith.constant 0 : index
    %c0_7 = arith.constant 0 : index
    %8 = vector.load %arg9[%c0_6, %c0_7] : memref<128x128xf32, #tpu.memory_space<vmem>>, vector<128x128xf32>
    tpu.vector_store %arg9[%c0_6, %c0_7], %7 {strides = array<i32>} : memref<128x128xf32, #tpu.memory_space<vmem>>, vector<128x128xf32>,
    %c0_i32_8 = arith.constant 0 : i32
    %9 = arith.cmpi eq, %arg1, %c0_i32_8 : i32
    %10 = arith.extui %9 : i1 to i32
    %c0_i32_9 = arith.constant 0 : i32
    %11 = arith.cmpi ne, %10, %c0_i32_9 : i32
    scf.if %11 {
      %c0_10 = arith.constant 0 : index
      %c0_11 = arith.constant 0 : index
      %12 = vector.load %arg9[%c0_10, %c0_11] : memref<128x128xf32, #tpu.memory_space<vmem>>, vector<128x128xf32>
      %13 = arith.truncf %12 : vector<128x128xf32> to vector<128x128xbf16>
      %c0_12 = arith.constant 0 : index
      %c0_13 = arith.constant 0 : index
      %14 = vector.load %arg5[%c0_12, %c0_13] : memref<128x128xbf16, #tpu.memory_space<vmem>>, vector<128x128xbf16>
      %cst_14 = arith.constant dense<0.000000e+00> : vector<128x128xf32>
      %15 = tpu.matmul %13, %14, %cst_14 {dimension_numbers = #tpu.dot_dimension_numbers<[1], [0], [0], [1], [0, 0, 1, 1], [], []>} : vector<128x128xbf16>, vector<128x128xbf16>, vector<128x128xf32> -> vector<128x128xf32>
      %c0_15 = arith.constant 0 : index
      %c0_16 = arith.constant 0 : index
      %16 = vector.load %arg6[%c0_15, %c0_16] : memref<1x128xf32, #tpu.memory_space<vmem>>, vector<1x128xf32>
      %17 = vector.broadcast %16 : vector<1x128xf32> to vector<128x128xf32>
      %18 = arith.addf %15, %17 : vector<128x128xf32>
      %c0_17 = arith.constant 0 : index
      %c0_18 = arith.constant 0 : index
      %19 = vector.load %arg4[%c0_17, %c0_18] : memref<128x128xbf16, #tpu.memory_space<vmem>>, vector<128x128xbf16>
      %c0_19 = arith.constant 0 : index
      %c0_20 = arith.constant 0 : index
      %20 = vector.load %arg7[%c0_19, %c0_20] : memref<128x128xbf16, #tpu.memory_space<vmem>>, vector<128x128xbf16>
      %cst_21 = arith.constant dense<0.000000e+00> : vector<128x128xf32>
      %21 = tpu.matmul %19, %20, %cst_21 {dimension_numbers = #tpu.dot_dimension_numbers<[1], [0], [0], [1], [0, 0, 1, 1], [], []>} : vector<128x128xbf16>, vector<128x128xbf16>, vector<128x128xf32> -> vector<128x128xf32>
      %22 = arith.addf %18, %21 : vector<128x128xf32>
      %cst_22 = arith.constant 0.000000e+00 : f32
      %23 = vector.broadcast %cst_22 : f32 to vector<128x128xf32>
      %24 = arith.maximumf %22, %23 : vector<128x128xf32>
      %25 = arith.truncf %24 : vector<128x128xf32> to vector<128x128xbf16>
      %c0_23 = arith.constant 0 : index
      %c0_24 = arith.constant 0 : index
      %26 = vector.load %arg8[%c0_23, %c0_24] : memref<128x128xbf16, #tpu.memory_space<vmem>>, vector<128x128xbf16>
      tpu.vector_store %arg8[%c0_23, %c0_24], %25 {strides = array<i32>} : memref<128x128xbf16, #tpu.memory_space<vmem>>, vector<128x128xbf16>,
    } else {
    }
    return
  }
  func.func @transform_0(%arg0: i32, %arg1: i32) -> (i32, i32) {
    %c0_i32 = arith.constant 0 : i32
    return %arg0, %arg1 : i32, i32
  }
  func.func @transform_1(%arg0: i32, %arg1: i32) -> (i32, i32) {
    %c0_i32 = arith.constant 0 : i32
    %c0_i32_0 = arith.constant 0 : i32
    return %arg1, %c0_i32 : i32, i32
  }
  func.func @transform_2(%arg0: i32, %arg1: i32) -> (i32, i32) {
    %c0_i32 = arith.constant 0 : i32
    %c0_i32_0 = arith.constant 0 : i32
    return %arg0, %c0_i32 : i32, i32
  }
  func.func @transform_3(%arg0: i32, %arg1: i32) -> (i32, i32) {
    %c0_i32 = arith.constant 0 : i32
    %c0_i32_0 = arith.constant 0 : i32
    %c0_i32_1 = arith.constant 0 : i32
    return %c0_i32, %c0_i32_0 : i32, i32
  }
  func.func @transform_4(%arg0: i32, %arg1: i32) -> (i32, i32) {
    %c0_i32 = arith.constant 0 : i32
    %c0_i32_0 = arith.constant 0 : i32
    %c0_i32_1 = arith.constant 0 : i32
    return %c0_i32, %c0_i32_0 : i32, i32
  }
  func.func @transform_5(%arg0: i32, %arg1: i32) -> (i32, i32) {
    %c0_i32 = arith.constant 0 : i32
    %c0_i32_0 = arith.constant 0 : i32
    %c0_i32_1 = arith.constant 0 : i32
    return %c0_i32, %c0_i32_0 : i32, i32
  }
  func.func @transform_6(%arg0: i32, %arg1: i32) -> (i32, i32) {
    %c0_i32 = arith.constant 0 : i32
    %c0_i32_0 = arith.constant 0 : i32
    return %arg0, %c0_i32 : i32, i32
  }
}

module attributes {stable_mosaic.version = 11 : i64} {
  func.func @_edge_decoder_kernel(%arg0: i32, %arg1: memref<128x128xbf16, #tpu.memory_space<vmem>>, %arg2: memref<128x128xbf16, #tpu.memory_space<vmem>>, %arg3: memref<128x128xbf16, #tpu.memory_space<vmem>>, %arg4: memref<128x128xbf16, #tpu.memory_space<vmem>>, %arg5: memref<1x128xf32, #tpu.memory_space<vmem>>, %arg6: memref<128x128xbf16, #tpu.memory_space<vmem>>, %arg7: memref<1x128xf32, #tpu.memory_space<vmem>>, %arg8: memref<128x128xbf16, #tpu.memory_space<vmem>>) attributes {dimension_semantics = [#tpu.dimension_semantics<parallel>], iteration_bounds = array<i64: 1>, scalar_prefetch = 0 : i64, scratch_operands = 0 : i64, tpu.core_type = #tpu.core_type<tc>, window_params = [{transform_indices = @transform_0, window_bounds = array<i64: 128, 128>}, {transform_indices = @transform_1, window_bounds = array<i64: 128, 128>}, {pipeline_mode = #tpu.pipeline_mode<synchronous>, transform_indices = @transform_2, window_bounds = array<i64: 128, 128>}, {pipeline_mode = #tpu.pipeline_mode<synchronous>, transform_indices = @transform_3, window_bounds = array<i64: 128, 128>}, {pipeline_mode = #tpu.pipeline_mode<synchronous>, transform_indices = @transform_4, window_bounds = array<i64: 1, 128>}, {pipeline_mode = #tpu.pipeline_mode<synchronous>, transform_indices = @transform_5, window_bounds = array<i64: 128, 128>}, {pipeline_mode = #tpu.pipeline_mode<synchronous>, transform_indices = @transform_6, window_bounds = array<i64: 1, 128>}, {transform_indices = @transform_7, window_bounds = array<i64: 128, 128>}]} {
    %c0 = arith.constant 0 : index
    %c0_0 = arith.constant 0 : index
    %0 = vector.load %arg1[%c0, %c0_0] : memref<128x128xbf16, #tpu.memory_space<vmem>>, vector<128x128xbf16>
    %c0_1 = arith.constant 0 : index
    %c0_2 = arith.constant 0 : index
    %1 = vector.load %arg3[%c0_1, %c0_2] : memref<128x128xbf16, #tpu.memory_space<vmem>>, vector<128x128xbf16>
    %cst = arith.constant dense<0.000000e+00> : vector<128x128xf32>
    %2 = tpu.matmul %0, %1, %cst {dimension_numbers = #tpu.dot_dimension_numbers<[1], [0], [0], [1], [0, 0, 1, 1], [], []>} : vector<128x128xbf16>, vector<128x128xbf16>, vector<128x128xf32> -> vector<128x128xf32>
    %c0_3 = arith.constant 0 : index
    %c0_4 = arith.constant 0 : index
    %3 = vector.load %arg2[%c0_3, %c0_4] : memref<128x128xbf16, #tpu.memory_space<vmem>>, vector<128x128xbf16>
    %c0_5 = arith.constant 0 : index
    %c0_6 = arith.constant 0 : index
    %4 = vector.load %arg4[%c0_5, %c0_6] : memref<128x128xbf16, #tpu.memory_space<vmem>>, vector<128x128xbf16>
    %cst_7 = arith.constant dense<0.000000e+00> : vector<128x128xf32>
    %5 = tpu.matmul %3, %4, %cst_7 {dimension_numbers = #tpu.dot_dimension_numbers<[1], [0], [0], [1], [0, 0, 1, 1], [], []>} : vector<128x128xbf16>, vector<128x128xbf16>, vector<128x128xf32> -> vector<128x128xf32>
    %6 = arith.addf %2, %5 : vector<128x128xf32>
    %c0_8 = arith.constant 0 : index
    %c0_9 = arith.constant 0 : index
    %7 = vector.load %arg5[%c0_8, %c0_9] : memref<1x128xf32, #tpu.memory_space<vmem>>, vector<1x128xf32>
    %8 = vector.broadcast %7 : vector<1x128xf32> to vector<128x128xf32>
    %9 = arith.addf %6, %8 : vector<128x128xf32>
    %cst_10 = arith.constant 0.000000e+00 : f32
    %10 = vector.broadcast %cst_10 : f32 to vector<128x128xf32>
    %11 = arith.maximumf %9, %10 : vector<128x128xf32>
    %12 = arith.truncf %11 : vector<128x128xf32> to vector<128x128xbf16>
    %c0_11 = arith.constant 0 : index
    %c0_12 = arith.constant 0 : index
    %13 = vector.load %arg6[%c0_11, %c0_12] : memref<128x128xbf16, #tpu.memory_space<vmem>>, vector<128x128xbf16>
    %cst_13 = arith.constant dense<0.000000e+00> : vector<128x128xf32>
    %14 = tpu.matmul %12, %13, %cst_13 {dimension_numbers = #tpu.dot_dimension_numbers<[1], [0], [0], [1], [0, 0, 1, 1], [], []>} : vector<128x128xbf16>, vector<128x128xbf16>, vector<128x128xf32> -> vector<128x128xf32>
    %c0_14 = arith.constant 0 : index
    %c0_15 = arith.constant 0 : index
    %15 = vector.load %arg7[%c0_14, %c0_15] : memref<1x128xf32, #tpu.memory_space<vmem>>, vector<1x128xf32>
    %16 = vector.broadcast %15 : vector<1x128xf32> to vector<128x128xf32>
    %17 = arith.addf %14, %16 : vector<128x128xf32>
    %18 = arith.truncf %17 : vector<128x128xf32> to vector<128x128xbf16>
    %c0_16 = arith.constant 0 : index
    %c0_17 = arith.constant 0 : index
    %19 = vector.load %arg8[%c0_16, %c0_17] : memref<128x128xbf16, #tpu.memory_space<vmem>>, vector<128x128xbf16>
    tpu.vector_store %arg8[%c0_16, %c0_17], %18 {strides = array<i32>} : memref<128x128xbf16, #tpu.memory_space<vmem>>, vector<128x128xbf16>,
    return
  }
  func.func @transform_0(%arg0: i32) -> (i32, i32) {
    %c0_i32 = arith.constant 0 : i32
    %c0_i32_0 = arith.constant 0 : i32
    return %arg0, %c0_i32 : i32, i32
  }
  func.func @transform_1(%arg0: i32) -> (i32, i32) {
    %c0_i32 = arith.constant 0 : i32
    %c0_i32_0 = arith.constant 0 : i32
    return %arg0, %c0_i32 : i32, i32
  }
  func.func @transform_2(%arg0: i32) -> (i32, i32) {
    %c0_i32 = arith.constant 0 : i32
    %c0_i32_0 = arith.constant 0 : i32
    %c0_i32_1 = arith.constant 0 : i32
    return %c0_i32, %c0_i32_0 : i32, i32
  }
  func.func @transform_3(%arg0: i32) -> (i32, i32) {
    %c0_i32 = arith.constant 0 : i32
    %c0_i32_0 = arith.constant 0 : i32
    %c0_i32_1 = arith.constant 0 : i32
    return %c0_i32, %c0_i32_0 : i32, i32
  }
  func.func @transform_4(%arg0: i32) -> (i32, i32) {
    %c0_i32 = arith.constant 0 : i32
    %c0_i32_0 = arith.constant 0 : i32
    %c0_i32_1 = arith.constant 0 : i32
    return %c0_i32, %c0_i32_0 : i32, i32
  }
  func.func @transform_5(%arg0: i32) -> (i32, i32) {
    %c0_i32 = arith.constant 0 : i32
    %c0_i32_0 = arith.constant 0 : i32
    %c0_i32_1 = arith.constant 0 : i32
    return %c0_i32, %c0_i32_0 : i32, i32
  }
  func.func @transform_6(%arg0: i32) -> (i32, i32) {
    %c0_i32 = arith.constant 0 : i32
    %c0_i32_0 = arith.constant 0 : i32
    %c0_i32_1 = arith.constant 0 : i32
    return %c0_i32, %c0_i32_0 : i32, i32
  }
  func.func @transform_7(%arg0: i32) -> (i32, i32) {
    %c0_i32 = arith.constant 0 : i32
    %c0_i32_0 = arith.constant 0 : i32
    return %arg0, %c0_i32 : i32, i32
  }
}

</mosaic_0001>

<llo_original>
// kernel: model_forward.8
$region0: #{model_forward.8}
  #allocation0 [shape = 'u32[]', space=smem, size = 0x4, offset = 0x4, fixed_abs, tag = 'smem constant byte address 0x4 - core index']
  #allocation1 [shape = 'u32[72,128]{1,0:T(1,128)}', space=vmem, size = 0x9000, scoped, tag = 'internal scratch']
  #allocation2 [shape = 'f32[128,128]{1,0:T(8,128)}', space=vmem, size = 0x10000, scoped, tag = 'scratch operand']
  %s0 = inlined_call_operand.vmem [shape: bf16[128,128], index: 0, kind: input, shape index: {}]
  %s1 = inlined_call_operand.vmem [shape: bf16[128,128], index: 1, kind: input, shape index: {}]
  %s2 = inlined_call_operand.vmem [shape: bf16[128,128], index: 2, kind: input, shape index: {}]
  %s3 = inlined_call_operand.vmem [shape: bf16[128,128], index: 3, kind: input, shape index: {}]
  %s4 = inlined_call_operand.vmem [shape: f32[1,128], index: 4, kind: input, shape index: {}]
  %s5 = inlined_call_operand.vmem [shape: bf16[128,128], index: 5, kind: input, shape index: {}]
  %s6 = inlined_call_operand.vmem [shape: bf16[128,128], index: 6, kind: output, shape index: {}]
  %s7 = sld [smem:[#allocation0]]
  $region42: #{model_forward.8} parent=0
    _
  %s9 = ssub.s32 1, %s7
  %s10 = scalar_select 0, %s9, %s7
  // Predicated region
  $region2: #{model_forward.8} parent=0 // pred_check
    _
  $region3: #{model_forward.8} parent=0 // pred_check_branch
    %12 = sbr.rel (0) target = $region5
  $region4: #{model_forward.8} parent=0 // pred_region
    _
  $region5: #{model_forward.8} parent=0 // pred_fallthru
    _
  // Predicated region
  $region6: #{model_forward.8} parent=0 // pred_check
    _
  $region7: #{model_forward.8} parent=0 // pred_check_branch
    %14 = sbr.rel (0) target = $region9
  $region8: #{model_forward.8} parent=0 // pred_region
    _
  $region9: #{model_forward.8} parent=0 // pred_fallthru
    _
  // Predicated region
  $region10: #{model_forward.8} parent=0 // pred_check
    _
  $region11: #{model_forward.8} parent=0 // pred_check_branch
    %16 = sbr.rel (0) target = $region13
  $region12: #{model_forward.8} parent=0 // pred_region
    _
  $region13: #{model_forward.8} parent=0 // pred_fallthru
    _
  // Predicated region
  $region14: #{model_forward.8} parent=0 // pred_check
    _
  $region15: #{model_forward.8} parent=0 // pred_check_branch
    %18 = sbr.rel (0) target = $region17
  $region16: #{model_forward.8} parent=0 // pred_region
    _
  $region17: #{model_forward.8} parent=0 // pred_fallthru
    _
  // Predicated region
  $region18: #{model_forward.8} parent=0 // pred_check
    _
  $region19: #{model_forward.8} parent=0 // pred_check_branch
    %20 = sbr.rel (0) target = $region21
  $region20: #{model_forward.8} parent=0 // pred_region
    _
  $region21: #{model_forward.8} parent=0 // pred_fallthru
    _
  // Predicated region
  $region22: #{model_forward.8} parent=0 // pred_check
    _
  $region23: #{model_forward.8} parent=0 // pred_check_branch
    %22 = sbr.rel (0) target = $region25
  $region24: #{model_forward.8} parent=0 // pred_region
    _
  $region25: #{model_forward.8} parent=0 // pred_fallthru
    _
  %p23 = scmp.eq.s32.totalorder 0, 0
  // Predicated region
  $region26: #{model_forward.8} parent=0 // pred_check
    %p24 = pneg %p23
  $region27: #{model_forward.8} parent=0 // pred_check_branch
    %26 = sbr.rel (%p24) target = $region29
  $region28: #{model_forward.8} parent=0 // pred_region
    %27 = vst [vmem:[#allocation2] sm:$0xff] 0.0
    %28 = vst [vmem:[#allocation2 + $0x8] sm:$0xff] 0.0
    %29 = vst [vmem:[#allocation2 + $0x10] sm:$0xff] 0.0
    %30 = vst [vmem:[#allocation2 + $0x18] sm:$0xff] 0.0
    %31 = vst [vmem:[#allocation2 + $0x20] sm:$0xff] 0.0
    %32 = vst [vmem:[#allocation2 + $0x28] sm:$0xff] 0.0
    %33 = vst [vmem:[#allocation2 + $0x30] sm:$0xff] 0.0
    %34 = vst [vmem:[#allocation2 + $0x38] sm:$0xff] 0.0
    %35 = vst [vmem:[#allocation2 + $0x40] sm:$0xff] 0.0
    %36 = vst [vmem:[#allocation2 + $0x48] sm:$0xff] 0.0
    %37 = vst [vmem:[#allocation2 + $0x50] sm:$0xff] 0.0
    %38 = vst [vmem:[#allocation2 + $0x58] sm:$0xff] 0.0
    %39 = vst [vmem:[#allocation2 + $0x60] sm:$0xff] 0.0
    %40 = vst [vmem:[#allocation2 + $0x68] sm:$0xff] 0.0
    %41 = vst [vmem:[#allocation2 + $0x70] sm:$0xff] 0.0
    %42 = vst [vmem:[#allocation2 + $0x78] sm:$0xff] 0.0
  $region29: #{model_forward.8} parent=0 // pred_fallthru
    _
  %v43 = vld [vmem:[#allocation2] sm:$0xff]
  %v44 = vld [vmem:[#allocation2 + $0x8] sm:$0xff]
  %v45 = vld [vmem:[#allocation2 + $0x10] sm:$0xff]
  %v46 = vld [vmem:[#allocation2 + $0x18] sm:$0xff]
  %v47 = vld [vmem:[#allocation2 + $0x20] sm:$0xff]
  %v48 = vld [vmem:[#allocation2 + $0x28] sm:$0xff]
  %v49 = vld [vmem:[#allocation2 + $0x30] sm:$0xff]
  %v50 = vld [vmem:[#allocation2 + $0x38] sm:$0xff]
  %v51 = vld [vmem:[#allocation2 + $0x40] sm:$0xff]
  %v52 = vld [vmem:[#allocation2 + $0x48] sm:$0xff]
  %v53 = vld [vmem:[#allocation2 + $0x50] sm:$0xff]
  %v54 = vld [vmem:[#allocation2 + $0x58] sm:$0xff]
  %v55 = vld [vmem:[#allocation2 + $0x60] sm:$0xff]
  %v56 = vld [vmem:[#allocation2 + $0x68] sm:$0xff]
  %v57 = vld [vmem:[#allocation2 + $0x70] sm:$0xff]
  %v58 = vld [vmem:[#allocation2 + $0x78] sm:$0xff]
  %v59 = vld [vmem:[%s0] sm:$0xf]
  %v60 = vld [vmem:[%s0 + $0x4] sm:$0xf]
  %v61 = vld [vmem:[%s0 + $0x8] sm:$0xf]
  %v62 = vld [vmem:[%s0 + $0xc] sm:$0xf]
  %v63 = vld [vmem:[%s0 + $0x10] sm:$0xf]
  %v64 = vld [vmem:[%s0 + $0x14] sm:$0xf]
  %v65 = vld [vmem:[%s0 + $0x18] sm:$0xf]
  %v66 = vld [vmem:[%s0 + $0x1c] sm:$0xf]
  %v67 = vld [vmem:[%s0 + $0x20] sm:$0xf]
  %v68 = vld [vmem:[%s0 + $0x24] sm:$0xf]
  %v69 = vld [vmem:[%s0 + $0x28] sm:$0xf]
  %v70 = vld [vmem:[%s0 + $0x2c] sm:$0xf]
  %v71 = vld [vmem:[%s0 + $0x30] sm:$0xf]
  %v72 = vld [vmem:[%s0 + $0x34] sm:$0xf]
  %v73 = vld [vmem:[%s0 + $0x38] sm:$0xf]
  %v74 = vld [vmem:[%s0 + $0x3c] sm:$0xf]
  %v75 = vld [vmem:[%s1] sm:$0xf]
  %v76 = vld [vmem:[%s1 + $0x4] sm:$0xf]
  %v77 = vld [vmem:[%s1 + $0x8] sm:$0xf]
  %v78 = vld [vmem:[%s1 + $0xc] sm:$0xf]
  %v79 = vld [vmem:[%s1 + $0x10] sm:$0xf]
  %v80 = vld [vmem:[%s1 + $0x14] sm:$0xf]
  %v81 = vld [vmem:[%s1 + $0x18] sm:$0xf]
  %v82 = vld [vmem:[%s1 + $0x1c] sm:$0xf]
  %v83 = vld [vmem:[%s1 + $0x20] sm:$0xf]
  %v84 = vld [vmem:[%s1 + $0x24] sm:$0xf]
  %v85 = vld [vmem:[%s1 + $0x28] sm:$0xf]
  %v86 = vld [vmem:[%s1 + $0x2c] sm:$0xf]
  %v87 = vld [vmem:[%s1 + $0x30] sm:$0xf]
  %v88 = vld [vmem:[%s1 + $0x34] sm:$0xf]
  %v89 = vld [vmem:[%s1 + $0x38] sm:$0xf]
  %v90 = vld [vmem:[%s1 + $0x3c] sm:$0xf]
  %v107 = vunpack.c.l.b16 %v59
  %v108 = vunpack.c.l.b16 %v60
  %v109 = vunpack.c.l.b16 %v61
  %v110 = vunpack.c.l.b16 %v62
  %v111 = vunpack.c.l.b16 %v63
  %v112 = vunpack.c.l.b16 %v64
  %v113 = vunpack.c.l.b16 %v65
  %v114 = vunpack.c.l.b16 %v66
  %v115 = vunpack.c.l.b16 %v67
  %v116 = vunpack.c.l.b16 %v68
  %v117 = vunpack.c.l.b16 %v69
  %v118 = vunpack.c.l.b16 %v70
  %v119 = vunpack.c.l.b16 %v71
  %v120 = vunpack.c.l.b16 %v72
  %v121 = vunpack.c.l.b16 %v73
  %v122 = vunpack.c.l.b16 %v74
  %v123 = vpack.c.b16 %v108, %v107
  %v124 = vpack.c.b16 %v110, %v109
  %v125 = vpack.c.b16 %v112, %v111
  %v126 = vpack.c.b16 %v114, %v113
  %v127 = vpack.c.b16 %v116, %v115
  %v128 = vpack.c.b16 %v118, %v117
  %v129 = vpack.c.b16 %v120, %v119
  %v130 = vpack.c.b16 %v122, %v121
  %v155 = vunpack.c.l.b16 %v75
  %v156 = vunpack.c.l.b16 %v76
  %v157 = vunpack.c.l.b16 %v77
  %v158 = vunpack.c.l.b16 %v78
  %v159 = vunpack.c.l.b16 %v79
  %v160 = vunpack.c.l.b16 %v80
  %v161 = vunpack.c.l.b16 %v81
  %v162 = vunpack.c.l.b16 %v82
  %v163 = vunpack.c.l.b16 %v83
  %v164 = vunpack.c.l.b16 %v84
  %v165 = vunpack.c.l.b16 %v85
  %v166 = vunpack.c.l.b16 %v86
  %v167 = vunpack.c.l.b16 %v87
  %v168 = vunpack.c.l.b16 %v88
  %v169 = vunpack.c.l.b16 %v89
  %v170 = vunpack.c.l.b16 %v90
  %v171 = vpack.c.b16 %v156, %v155
  %v172 = vpack.c.b16 %v158, %v157
  %v173 = vpack.c.b16 %v160, %v159
  %v174 = vpack.c.b16 %v162, %v161
  %v175 = vpack.c.b16 %v164, %v163
  %v176 = vpack.c.b16 %v166, %v165
  %v177 = vpack.c.b16 %v168, %v167
  %v178 = vpack.c.b16 %v170, %v169
  %187 = vmatpush.bf16.msra.mxu0 %v178
  %188 = vmatpush.bf16.msra.mxu0 %v177
  %189 = vmatpush.bf16.msra.mxu0 %v176
  %190 = vmatpush.bf16.msra.mxu0 %v175
  %191 = vmatpush.bf16.msra.mxu0 %v174
  %192 = vmatpush.bf16.msra.mxu0 %v173
  %193 = vmatpush.bf16.msra.mxu0 %v172
  %194 = vmatpush.bf16.msra.mxu0 %v171
  %195 = vmatmul.bf16.gmra.mxu0 %v123
  %v196 = vpop.f32.mrf.mxu0
  %v197 = vadd.f32 0.0, %v196
  %v198 = vpop.f32.mrf.mxu0
  %v199 = vadd.f32 0.0, %v198
  %200 = vmatmul.bf16.gmra.mxu0 %v124
  %v201 = vpop.f32.mrf.mxu0
  %v202 = vadd.f32 0.0, %v201
  %v203 = vpop.f32.mrf.mxu0
  %v204 = vadd.f32 0.0, %v203
  %205 = vmatmul.bf16.gmra.mxu0 %v125
  %v206 = vpop.f32.mrf.mxu0
  %v207 = vadd.f32 0.0, %v206
  %v208 = vpop.f32.mrf.mxu0
  %v209 = vadd.f32 0.0, %v208
  %210 = vmatmul.bf16.gmra.mxu0 %v126
  %v211 = vpop.f32.mrf.mxu0
  %v212 = vadd.f32 0.0, %v211
  %v213 = vpop.f32.mrf.mxu0
  %v214 = vadd.f32 0.0, %v213
  %215 = vmatmul.bf16.gmra.mxu0 %v127
  %v216 = vpop.f32.mrf.mxu0
  %v217 = vadd.f32 0.0, %v216
  %v218 = vpop.f32.mrf.mxu0
  %v219 = vadd.f32 0.0, %v218
  %220 = vmatmul.bf16.gmra.mxu0 %v128
  %v221 = vpop.f32.mrf.mxu0
  %v222 = vadd.f32 0.0, %v221
  %v223 = vpop.f32.mrf.mxu0
  %v224 = vadd.f32 0.0, %v223
  %225 = vmatmul.bf16.gmra.mxu0 %v129
  %v226 = vpop.f32.mrf.mxu0
  %v227 = vadd.f32 0.0, %v226
  %v228 = vpop.f32.mrf.mxu0
  %v229 = vadd.f32 0.0, %v228
  %230 = vmatmul.bf16.gmra.mxu0 %v130
  %v231 = vpop.f32.mrf.mxu0
  %v232 = vadd.f32 0.0, %v231
  %v233 = vpop.f32.mrf.mxu0
  %v234 = vadd.f32 0.0, %v233
  %235 = vdwg.mxu0
  %v236 = vadd.f32 %v43, %v197
  %v237 = vadd.f32 %v44, %v199
  %v238 = vadd.f32 %v45, %v202
  %v239 = vadd.f32 %v46, %v204
  %v240 = vadd.f32 %v47, %v207
  %v241 = vadd.f32 %v48, %v209
  %v242 = vadd.f32 %v49, %v212
  %v243 = vadd.f32 %v50, %v214
  %v244 = vadd.f32 %v51, %v217
  %v245 = vadd.f32 %v52, %v219
  %v246 = vadd.f32 %v53, %v222
  %v247 = vadd.f32 %v54, %v224
  %v248 = vadd.f32 %v55, %v227
  %v249 = vadd.f32 %v56, %v229
  %v250 = vadd.f32 %v57, %v232
  %v251 = vadd.f32 %v58, %v234
  %252 = vst [vmem:[#allocation2] sm:$0xff] %v236
  %253 = vst [vmem:[#allocation2 + $0x8] sm:$0xff] %v237
  %254 = vst [vmem:[#allocation2 + $0x10] sm:$0xff] %v238
  %255 = vst [vmem:[#allocation2 + $0x18] sm:$0xff] %v239
  %256 = vst [vmem:[#allocation2 + $0x20] sm:$0xff] %v240
  %257 = vst [vmem:[#allocation2 + $0x28] sm:$0xff] %v241
  %258 = vst [vmem:[#allocation2 + $0x30] sm:$0xff] %v242
  %259 = vst [vmem:[#allocation2 + $0x38] sm:$0xff] %v243
  %260 = vst [vmem:[#allocation2 + $0x40] sm:$0xff] %v244
  %261 = vst [vmem:[#allocation2 + $0x48] sm:$0xff] %v245
  %262 = vst [vmem:[#allocation2 + $0x50] sm:$0xff] %v246
  %263 = vst [vmem:[#allocation2 + $0x58] sm:$0xff] %v247
  %264 = vst [vmem:[#allocation2 + $0x60] sm:$0xff] %v248
  %265 = vst [vmem:[#allocation2 + $0x68] sm:$0xff] %v249
  %266 = vst [vmem:[#allocation2 + $0x70] sm:$0xff] %v250
  %267 = vst [vmem:[#allocation2 + $0x78] sm:$0xff] %v251
  // Predicated region
  $region30: #{model_forward.8} parent=0 // pred_check
    %p268 = pneg %p23
  $region31: #{model_forward.8} parent=0 // pred_check_branch
    %270 = sbr.rel (%p268) target = $region33
  $region32: #{model_forward.8} parent=0 // pred_region
    %v271 = vld [vmem:[#allocation2] sm:$0xff]
    %v272 = vld [vmem:[#allocation2 + $0x8] sm:$0xff]
    %v273 = vld [vmem:[#allocation2 + $0x10] sm:$0xff]
    %v274 = vld [vmem:[#allocation2 + $0x18] sm:$0xff]
    %v275 = vld [vmem:[#allocation2 + $0x20] sm:$0xff]
    %v276 = vld [vmem:[#allocation2 + $0x28] sm:$0xff]
    %v277 = vld [vmem:[#allocation2 + $0x30] sm:$0xff]
    %v278 = vld [vmem:[#allocation2 + $0x38] sm:$0xff]
    %v279 = vld [vmem:[#allocation2 + $0x40] sm:$0xff]
    %v280 = vld [vmem:[#allocation2 + $0x48] sm:$0xff]
    %v281 = vld [vmem:[#allocation2 + $0x50] sm:$0xff]
    %v282 = vld [vmem:[#allocation2 + $0x58] sm:$0xff]
    %v283 = vld [vmem:[#allocation2 + $0x60] sm:$0xff]
    %v284 = vld [vmem:[#allocation2 + $0x68] sm:$0xff]
    %v285 = vld [vmem:[#allocation2 + $0x70] sm:$0xff]
    %v286 = vld [vmem:[#allocation2 + $0x78] sm:$0xff]
    %v287 = vpack.c.bf16 %v272, %v271
    %v288 = vpack.c.bf16 %v274, %v273
    %v289 = vpack.c.bf16 %v276, %v275
    %v290 = vpack.c.bf16 %v278, %v277
    %v291 = vpack.c.bf16 %v280, %v279
    %v292 = vpack.c.bf16 %v282, %v281
    %v293 = vpack.c.bf16 %v284, %v283
    %v294 = vpack.c.bf16 %v286, %v285
    %v295 = vld [vmem:[%s3] sm:$0xf]
    %v296 = vld [vmem:[%s3 + $0x4] sm:$0xf]
    %v297 = vld [vmem:[%s3 + $0x8] sm:$0xf]
    %v298 = vld [vmem:[%s3 + $0xc] sm:$0xf]
    %v299 = vld [vmem:[%s3 + $0x10] sm:$0xf]
    %v300 = vld [vmem:[%s3 + $0x14] sm:$0xf]
    %v301 = vld [vmem:[%s3 + $0x18] sm:$0xf]
    %v302 = vld [vmem:[%s3 + $0x1c] sm:$0xf]
    %v303 = vld [vmem:[%s3 + $0x20] sm:$0xf]
    %v304 = vld [vmem:[%s3 + $0x24] sm:$0xf]
    %v305 = vld [vmem:[%s3 + $0x28] sm:$0xf]
    %v306 = vld [vmem:[%s3 + $0x2c] sm:$0xf]
    %v307 = vld [vmem:[%s3 + $0x30] sm:$0xf]
    %v308 = vld [vmem:[%s3 + $0x34] sm:$0xf]
    %v309 = vld [vmem:[%s3 + $0x38] sm:$0xf]
    %v310 = vld [vmem:[%s3 + $0x3c] sm:$0xf]
    %v311 = vld [vmem:[%s4] sm:$0x1]
    %v313 = vperm.slane %v311, 0
    %v331 = vunpack.c.l.b16 %v295
    %v332 = vunpack.c.l.b16 %v296
    %v333 = vunpack.c.l.b16 %v297
    %v334 = vunpack.c.l.b16 %v298
    %v335 = vunpack.c.l.b16 %v299
    %v336 = vunpack.c.l.b16 %v300
    %v337 = vunpack.c.l.b16 %v301
    %v338 = vunpack.c.l.b16 %v302
    %v339 = vunpack.c.l.b16 %v303
    %v340 = vunpack.c.l.b16 %v304
    %v341 = vunpack.c.l.b16 %v305
    %v342 = vunpack.c.l.b16 %v306
    %v343 = vunpack.c.l.b16 %v307
    %v344 = vunpack.c.l.b16 %v308
    %v345 = vunpack.c.l.b16 %v309
    %v346 = vunpack.c.l.b16 %v310
    %v347 = vpack.c.b16 %v332, %v331
    %v348 = vpack.c.b16 %v334, %v333
    %v349 = vpack.c.b16 %v336, %v335
    %v350 = vpack.c.b16 %v338, %v337
    %v351 = vpack.c.b16 %v340, %v339
    %v352 = vpack.c.b16 %v342, %v341
    %v353 = vpack.c.b16 %v344, %v343
    %v354 = vpack.c.b16 %v346, %v345
    %363 = vmatpush.bf16.msra.mxu0 %v354
    %364 = vmatpush.bf16.msra.mxu0 %v353
    %365 = vmatpush.bf16.msra.mxu0 %v352
    %366 = vmatpush.bf16.msra.mxu0 %v351
    %367 = vmatpush.bf16.msra.mxu0 %v350
    %368 = vmatpush.bf16.msra.mxu0 %v349
    %369 = vmatpush.bf16.msra.mxu0 %v348
    %370 = vmatpush.bf16.msra.mxu0 %v347
    %371 = vmatmul.bf16.gmra.mxu0 %v287
    %v372 = vpop.f32.mrf.mxu0
    %v373 = vadd.f32 %v313, %v372
    %v374 = vpop.f32.mrf.mxu0
    %v375 = vadd.f32 %v313, %v374
    %376 = vmatmul.bf16.gmra.mxu0 %v288
    %v377 = vpop.f32.mrf.mxu0
    %v378 = vadd.f32 %v313, %v377
    %v379 = vpop.f32.mrf.mxu0
    %v380 = vadd.f32 %v313, %v379
    %381 = vmatmul.bf16.gmra.mxu0 %v289
    %v382 = vpop.f32.mrf.mxu0
    %v383 = vadd.f32 %v313, %v382
    %v384 = vpop.f32.mrf.mxu0
    %v385 = vadd.f32 %v313, %v384
    %386 = vmatmul.bf16.gmra.mxu0 %v290
    %v387 = vpop.f32.mrf.mxu0
    %v388 = vadd.f32 %v313, %v387
    %v389 = vpop.f32.mrf.mxu0
    %v390 = vadd.f32 %v313, %v389
    %391 = vmatmul.bf16.gmra.mxu0 %v291
    %v392 = vpop.f32.mrf.mxu0
    %v393 = vadd.f32 %v313, %v392
    %v394 = vpop.f32.mrf.mxu0
    %v395 = vadd.f32 %v313, %v394
    %396 = vmatmul.bf16.gmra.mxu0 %v292
    %v397 = vpop.f32.mrf.mxu0
    %v398 = vadd.f32 %v313, %v397
    %v399 = vpop.f32.mrf.mxu0
    %v400 = vadd.f32 %v313, %v399
    %401 = vmatmul.bf16.gmra.mxu0 %v293
    %v402 = vpop.f32.mrf.mxu0
    %v403 = vadd.f32 %v313, %v402
    %v404 = vpop.f32.mrf.mxu0
    %v405 = vadd.f32 %v313, %v404
    %406 = vmatmul.bf16.gmra.mxu0 %v294
    %v407 = vpop.f32.mrf.mxu0
    %v408 = vadd.f32 %v313, %v407
    %v409 = vpop.f32.mrf.mxu0
    %v410 = vadd.f32 %v313, %v409
    %411 = vdwg.mxu0
    %v412 = vld [vmem:[%s2] sm:$0xf]
    %v413 = vld [vmem:[%s2 + $0x4] sm:$0xf]
    %v414 = vld [vmem:[%s2 + $0x8] sm:$0xf]
    %v415 = vld [vmem:[%s2 + $0xc] sm:$0xf]
    %v416 = vld [vmem:[%s2 + $0x10] sm:$0xf]
    %v417 = vld [vmem:[%s2 + $0x14] sm:$0xf]
    %v418 = vld [vmem:[%s2 + $0x18] sm:$0xf]
    %v419 = vld [vmem:[%s2 + $0x1c] sm:$0xf]
    %v420 = vld [vmem:[%s2 + $0x20] sm:$0xf]
    %v421 = vld [vmem:[%s2 + $0x24] sm:$0xf]
    %v422 = vld [vmem:[%s2 + $0x28] sm:$0xf]
    %v423 = vld [vmem:[%s2 + $0x2c] sm:$0xf]
    %v424 = vld [vmem:[%s2 + $0x30] sm:$0xf]
    %v425 = vld [vmem:[%s2 + $0x34] sm:$0xf]
    %v426 = vld [vmem:[%s2 + $0x38] sm:$0xf]
    %v427 = vld [vmem:[%s2 + $0x3c] sm:$0xf]
    %v428 = vld [vmem:[%s5] sm:$0xf]
    %v429 = vld [vmem:[%s5 + $0x4] sm:$0xf]
    %v430 = vld [vmem:[%s5 + $0x8] sm:$0xf]
    %v431 = vld [vmem:[%s5 + $0xc] sm:$0xf]
    %v432 = vld [vmem:[%s5 + $0x10] sm:$0xf]
    %v433 = vld [vmem:[%s5 + $0x14] sm:$0xf]
    %v434 = vld [vmem:[%s5 + $0x18] sm:$0xf]
    %v435 = vld [vmem:[%s5 + $0x1c] sm:$0xf]
    %v436 = vld [vmem:[%s5 + $0x20] sm:$0xf]
    %v437 = vld [vmem:[%s5 + $0x24] sm:$0xf]
    %v438 = vld [vmem:[%s5 + $0x28] sm:$0xf]
    %v439 = vld [vmem:[%s5 + $0x2c] sm:$0xf]
    %v440 = vld [vmem:[%s5 + $0x30] sm:$0xf]
    %v441 = vld [vmem:[%s5 + $0x34] sm:$0xf]
    %v442 = vld [vmem:[%s5 + $0x38] sm:$0xf]
    %v443 = vld [vmem:[%s5 + $0x3c] sm:$0xf]
    %v460 = vunpack.c.l.b16 %v412
    %v461 = vunpack.c.l.b16 %v413
    %v462 = vunpack.c.l.b16 %v414
    %v463 = vunpack.c.l.b16 %v415
    %v464 = vunpack.c.l.b16 %v416
    %v465 = vunpack.c.l.b16 %v417
    %v466 = vunpack.c.l.b16 %v418
    %v467 = vunpack.c.l.b16 %v419
    %v468 = vunpack.c.l.b16 %v420
    %v469 = vunpack.c.l.b16 %v421
    %v470 = vunpack.c.l.b16 %v422
    %v471 = vunpack.c.l.b16 %v423
    %v472 = vunpack.c.l.b16 %v424
    %v473 = vunpack.c.l.b16 %v425
    %v474 = vunpack.c.l.b16 %v426
    %v475 = vunpack.c.l.b16 %v427
    %v476 = vpack.c.b16 %v461, %v460
    %v477 = vpack.c.b16 %v463, %v462
    %v478 = vpack.c.b16 %v465, %v464
    %v479 = vpack.c.b16 %v467, %v466
    %v480 = vpack.c.b16 %v469, %v468
    %v481 = vpack.c.b16 %v471, %v470
    %v482 = vpack.c.b16 %v473, %v472
    %v483 = vpack.c.b16 %v475, %v474
    %v508 = vunpack.c.l.b16 %v428
    %v509 = vunpack.c.l.b16 %v429
    %v510 = vunpack.c.l.b16 %v430
    %v511 = vunpack.c.l.b16 %v431
    %v512 = vunpack.c.l.b16 %v432
    %v513 = vunpack.c.l.b16 %v433
    %v514 = vunpack.c.l.b16 %v434
    %v515 = vunpack.c.l.b16 %v435
    %v516 = vunpack.c.l.b16 %v436
    %v517 = vunpack.c.l.b16 %v437
    %v518 = vunpack.c.l.b16 %v438
    %v519 = vunpack.c.l.b16 %v439
    %v520 = vunpack.c.l.b16 %v440
    %v521 = vunpack.c.l.b16 %v441
    %v522 = vunpack.c.l.b16 %v442
    %v523 = vunpack.c.l.b16 %v443
    %v524 = vpack.c.b16 %v509, %v508
    %v525 = vpack.c.b16 %v511, %v510
    %v526 = vpack.c.b16 %v513, %v512
    %v527 = vpack.c.b16 %v515, %v514
    %v528 = vpack.c.b16 %v517, %v516
    %v529 = vpack.c.b16 %v519, %v518
    %v530 = vpack.c.b16 %v521, %v520
    %v531 = vpack.c.b16 %v523, %v522
    %540 = vmatpush.bf16.msra.mxu0 %v531
    %541 = vmatpush.bf16.msra.mxu0 %v530
    %542 = vmatpush.bf16.msra.mxu0 %v529
    %543 = vmatpush.bf16.msra.mxu0 %v528
    %544 = vmatpush.bf16.msra.mxu0 %v527
    %545 = vmatpush.bf16.msra.mxu0 %v526
    %546 = vmatpush.bf16.msra.mxu0 %v525
    %547 = vmatpush.bf16.msra.mxu0 %v524
    %548 = vmatmul.bf16.gmra.mxu0 %v476
    %v549 = vpop.f32.mrf.mxu0
    %v550 = vadd.f32 0.0, %v549
    %v551 = vpop.f32.mrf.mxu0
    %v552 = vadd.f32 0.0, %v551
    %553 = vmatmul.bf16.gmra.mxu0 %v477
    %v554 = vpop.f32.mrf.mxu0
    %v555 = vadd.f32 0.0, %v554
    %v556 = vpop.f32.mrf.mxu0
    %v557 = vadd.f32 0.0, %v556
    %558 = vmatmul.bf16.gmra.mxu0 %v478
    %v559 = vpop.f32.mrf.mxu0
    %v560 = vadd.f32 0.0, %v559
    %v561 = vpop.f32.mrf.mxu0
    %v562 = vadd.f32 0.0, %v561
    %563 = vmatmul.bf16.gmra.mxu0 %v479
    %v564 = vpop.f32.mrf.mxu0
    %v565 = vadd.f32 0.0, %v564
    %v566 = vpop.f32.mrf.mxu0
    %v567 = vadd.f32 0.0, %v566
    %568 = vmatmul.bf16.gmra.mxu0 %v480
    %v569 = vpop.f32.mrf.mxu0
    %v570 = vadd.f32 0.0, %v569
    %v571 = vpop.f32.mrf.mxu0
    %v572 = vadd.f32 0.0, %v571
    %573 = vmatmul.bf16.gmra.mxu0 %v481
    %v574 = vpop.f32.mrf.mxu0
    %v575 = vadd.f32 0.0, %v574
    %v576 = vpop.f32.mrf.mxu0
    %v577 = vadd.f32 0.0, %v576
    %578 = vmatmul.bf16.gmra.mxu0 %v482
    %v579 = vpop.f32.mrf.mxu0
    %v580 = vadd.f32 0.0, %v579
    %v581 = vpop.f32.mrf.mxu0
    %v582 = vadd.f32 0.0, %v581
    %583 = vmatmul.bf16.gmra.mxu0 %v483
    %v584 = vpop.f32.mrf.mxu0
    %v585 = vadd.f32 0.0, %v584
    %v586 = vpop.f32.mrf.mxu0
    %v587 = vadd.f32 0.0, %v586
    %588 = vdwg.mxu0
    %v589 = vadd.f32 %v373, %v550
    %v590 = vadd.f32 %v375, %v552
    %v591 = vadd.f32 %v378, %v555
    %v592 = vadd.f32 %v380, %v557
    %v593 = vadd.f32 %v383, %v560
    %v594 = vadd.f32 %v385, %v562
    %v595 = vadd.f32 %v388, %v565
    %v596 = vadd.f32 %v390, %v567
    %v597 = vadd.f32 %v393, %v570
    %v598 = vadd.f32 %v395, %v572
    %v599 = vadd.f32 %v398, %v575
    %v600 = vadd.f32 %v400, %v577
    %v601 = vadd.f32 %v403, %v580
    %v602 = vadd.f32 %v405, %v582
    %v603 = vadd.f32 %v408, %v585
    %v604 = vadd.f32 %v410, %v587
    %v605 = vpack.c.bf16 %v589, %v589
    %v606 = vpack.c.bf16 %v590, %v590
    %v607 = vpack.c.bf16 %v591, %v591
    %v608 = vpack.c.bf16 %v592, %v592
    %v609 = vpack.c.bf16 %v593, %v593
    %v610 = vpack.c.bf16 %v594, %v594
    %v611 = vpack.c.bf16 %v595, %v595
    %v612 = vpack.c.bf16 %v596, %v596
    %v613 = vpack.c.bf16 %v597, %v597
    %v614 = vpack.c.bf16 %v598, %v598
    %v615 = vpack.c.bf16 %v599, %v599
    %v616 = vpack.c.bf16 %v600, %v600
    %v617 = vpack.c.bf16 %v601, %v601
    %v618 = vpack.c.bf16 %v602, %v602
    %v619 = vpack.c.bf16 %v603, %v603
    %v620 = vpack.c.bf16 %v604, %v604
    %621 = vst [vmem:[%s6] sm:$0xf] %v605
    %622 = vst [vmem:[%s6 + $0x4] sm:$0xf] %v606
    %623 = vst [vmem:[%s6 + $0x8] sm:$0xf] %v607
    %624 = vst [vmem:[%s6 + $0xc] sm:$0xf] %v608
    %625 = vst [vmem:[%s6 + $0x10] sm:$0xf] %v609
    %626 = vst [vmem:[%s6 + $0x14] sm:$0xf] %v610
    %627 = vst [vmem:[%s6 + $0x18] sm:$0xf] %v611
    %628 = vst [vmem:[%s6 + $0x1c] sm:$0xf] %v612
    %629 = vst [vmem:[%s6 + $0x20] sm:$0xf] %v613
    %630 = vst [vmem:[%s6 + $0x24] sm:$0xf] %v614
    %631 = vst [vmem:[%s6 + $0x28] sm:$0xf] %v615
    %632 = vst [vmem:[%s6 + $0x2c] sm:$0xf] %v616
    %633 = vst [vmem:[%s6 + $0x30] sm:$0xf] %v617
    %634 = vst [vmem:[%s6 + $0x34] sm:$0xf] %v618
    %635 = vst [vmem:[%s6 + $0x38] sm:$0xf] %v619
    %636 = vst [vmem:[%s6 + $0x3c] sm:$0xf] %v620
  $region33: #{model_forward.8} parent=0 // pred_fallthru
    _
  // Predicated region
  $region34: #{model_forward.8} parent=0 // pred_check
    _
  $region35: #{model_forward.8} parent=0 // pred_check_branch
    %638 = sbr.rel (0) target = $region37
  $region36: #{model_forward.8} parent=0 // pred_region
    _
  $region37: #{model_forward.8} parent=0 // pred_fallthru
    _
  // Predicated region
  $region38: #{model_forward.8} parent=0 // pred_check
    _
  $region39: #{model_forward.8} parent=0 // pred_check_branch
    %640 = sbr.rel (0) target = $region41
  $region40: #{model_forward.8} parent=0 // pred_region
    _
  $region41: #{model_forward.8} parent=0 // pred_fallthru
    _

// kernel: model_forward.5
$region0: #{model_forward.5}
  #allocation0 [shape = 'u32[]', space=smem, size = 0x4, offset = 0x4, fixed_abs, tag = 'smem constant byte address 0x4 - core index']
  #allocation1 [shape = 'u32[72,128]{1,0:T(1,128)}', space=vmem, size = 0x9000, scoped, tag = 'internal scratch']
  #allocation2 [shape = 'f32[128,128]{1,0:T(8,128)}', space=vmem, size = 0x10000, scoped, tag = 'scratch operand']
  %s0 = inlined_call_operand.vmem [shape: bf16[128,128], index: 0, kind: input, shape index: {}]
  %s1 = inlined_call_operand.vmem [shape: bf16[128,128], index: 1, kind: input, shape index: {}]
  %s2 = inlined_call_operand.vmem [shape: bf16[128,128], index: 2, kind: input, shape index: {}]
  %s3 = inlined_call_operand.vmem [shape: bf16[128,128], index: 3, kind: input, shape index: {}]
  %s4 = inlined_call_operand.vmem [shape: f32[1,128], index: 4, kind: input, shape index: {}]
  %s5 = inlined_call_operand.vmem [shape: bf16[128,128], index: 5, kind: input, shape index: {}]
  %s6 = inlined_call_operand.vmem [shape: bf16[128,128], index: 6, kind: output, shape index: {}]
  %s7 = sld [smem:[#allocation0]]
  $region42: #{model_forward.5} parent=0
    _
  %s9 = ssub.s32 1, %s7
  %s10 = scalar_select 0, %s9, %s7
  // Predicated region
  $region2: #{model_forward.5} parent=0 // pred_check
    _
  $region3: #{model_forward.5} parent=0 // pred_check_branch
    %12 = sbr.rel (0) target = $region5
  $region4: #{model_forward.5} parent=0 // pred_region
    _
  $region5: #{model_forward.5} parent=0 // pred_fallthru
    _
  // Predicated region
  $region6: #{model_forward.5} parent=0 // pred_check
    _
  $region7: #{model_forward.5} parent=0 // pred_check_branch
    %14 = sbr.rel (0) target = $region9
  $region8: #{model_forward.5} parent=0 // pred_region
    _
  $region9: #{model_forward.5} parent=0 // pred_fallthru
    _
  // Predicated region
  $region10: #{model_forward.5} parent=0 // pred_check
    _
  $region11: #{model_forward.5} parent=0 // pred_check_branch
    %16 = sbr.rel (0) target = $region13
  $region12: #{model_forward.5} parent=0 // pred_region
    _
  $region13: #{model_forward.5} parent=0 // pred_fallthru
    _
  // Predicated region
  $region14: #{model_forward.5} parent=0 // pred_check
    _
  $region15: #{model_forward.5} parent=0 // pred_check_branch
    %18 = sbr.rel (0) target = $region17
  $region16: #{model_forward.5} parent=0 // pred_region
    _
  $region17: #{model_forward.5} parent=0 // pred_fallthru
    _
  // Predicated region
  $region18: #{model_forward.5} parent=0 // pred_check
    _
  $region19: #{model_forward.5} parent=0 // pred_check_branch
    %20 = sbr.rel (0) target = $region21
  $region20: #{model_forward.5} parent=0 // pred_region
    _
  $region21: #{model_forward.5} parent=0 // pred_fallthru
    _
  // Predicated region
  $region22: #{model_forward.5} parent=0 // pred_check
    _
  $region23: #{model_forward.5} parent=0 // pred_check_branch
    %22 = sbr.rel (0) target = $region25
  $region24: #{model_forward.5} parent=0 // pred_region
    _
  $region25: #{model_forward.5} parent=0 // pred_fallthru
    _
  %p23 = scmp.eq.s32.totalorder 0, 0
  // Predicated region
  $region26: #{model_forward.5} parent=0 // pred_check
    %p24 = pneg %p23
  $region27: #{model_forward.5} parent=0 // pred_check_branch
    %26 = sbr.rel (%p24) target = $region29
  $region28: #{model_forward.5} parent=0 // pred_region
    %27 = vst [vmem:[#allocation2] sm:$0xff] 0.0
    %28 = vst [vmem:[#allocation2 + $0x8] sm:$0xff] 0.0
    %29 = vst [vmem:[#allocation2 + $0x10] sm:$0xff] 0.0
    %30 = vst [vmem:[#allocation2 + $0x18] sm:$0xff] 0.0
    %31 = vst [vmem:[#allocation2 + $0x20] sm:$0xff] 0.0
    %32 = vst [vmem:[#allocation2 + $0x28] sm:$0xff] 0.0
    %33 = vst [vmem:[#allocation2 + $0x30] sm:$0xff] 0.0
    %34 = vst [vmem:[#allocation2 + $0x38] sm:$0xff] 0.0
    %35 = vst [vmem:[#allocation2 + $0x40] sm:$0xff] 0.0
    %36 = vst [vmem:[#allocation2 + $0x48] sm:$0xff] 0.0
    %37 = vst [vmem:[#allocation2 + $0x50] sm:$0xff] 0.0
    %38 = vst [vmem:[#allocation2 + $0x58] sm:$0xff] 0.0
    %39 = vst [vmem:[#allocation2 + $0x60] sm:$0xff] 0.0
    %40 = vst [vmem:[#allocation2 + $0x68] sm:$0xff] 0.0
    %41 = vst [vmem:[#allocation2 + $0x70] sm:$0xff] 0.0
    %42 = vst [vmem:[#allocation2 + $0x78] sm:$0xff] 0.0
  $region29: #{model_forward.5} parent=0 // pred_fallthru
    _
  %v43 = vld [vmem:[#allocation2] sm:$0xff]
  %v44 = vld [vmem:[#allocation2 + $0x8] sm:$0xff]
  %v45 = vld [vmem:[#allocation2 + $0x10] sm:$0xff]
  %v46 = vld [vmem:[#allocation2 + $0x18] sm:$0xff]
  %v47 = vld [vmem:[#allocation2 + $0x20] sm:$0xff]
  %v48 = vld [vmem:[#allocation2 + $0x28] sm:$0xff]
  %v49 = vld [vmem:[#allocation2 + $0x30] sm:$0xff]
  %v50 = vld [vmem:[#allocation2 + $0x38] sm:$0xff]
  %v51 = vld [vmem:[#allocation2 + $0x40] sm:$0xff]
  %v52 = vld [vmem:[#allocation2 + $0x48] sm:$0xff]
  %v53 = vld [vmem:[#allocation2 + $0x50] sm:$0xff]
  %v54 = vld [vmem:[#allocation2 + $0x58] sm:$0xff]
  %v55 = vld [vmem:[#allocation2 + $0x60] sm:$0xff]
  %v56 = vld [vmem:[#allocation2 + $0x68] sm:$0xff]
  %v57 = vld [vmem:[#allocation2 + $0x70] sm:$0xff]
  %v58 = vld [vmem:[#allocation2 + $0x78] sm:$0xff]
  %v59 = vld [vmem:[%s0] sm:$0xf]
  %v60 = vld [vmem:[%s0 + $0x4] sm:$0xf]
  %v61 = vld [vmem:[%s0 + $0x8] sm:$0xf]
  %v62 = vld [vmem:[%s0 + $0xc] sm:$0xf]
  %v63 = vld [vmem:[%s0 + $0x10] sm:$0xf]
  %v64 = vld [vmem:[%s0 + $0x14] sm:$0xf]
  %v65 = vld [vmem:[%s0 + $0x18] sm:$0xf]
  %v66 = vld [vmem:[%s0 + $0x1c] sm:$0xf]
  %v67 = vld [vmem:[%s0 + $0x20] sm:$0xf]
  %v68 = vld [vmem:[%s0 + $0x24] sm:$0xf]
  %v69 = vld [vmem:[%s0 + $0x28] sm:$0xf]
  %v70 = vld [vmem:[%s0 + $0x2c] sm:$0xf]
  %v71 = vld [vmem:[%s0 + $0x30] sm:$0xf]
  %v72 = vld [vmem:[%s0 + $0x34] sm:$0xf]
  %v73 = vld [vmem:[%s0 + $0x38] sm:$0xf]
  %v74 = vld [vmem:[%s0 + $0x3c] sm:$0xf]
  %v75 = vld [vmem:[%s1] sm:$0xf]
  %v76 = vld [vmem:[%s1 + $0x4] sm:$0xf]
  %v77 = vld [vmem:[%s1 + $0x8] sm:$0xf]
  %v78 = vld [vmem:[%s1 + $0xc] sm:$0xf]
  %v79 = vld [vmem:[%s1 + $0x10] sm:$0xf]
  %v80 = vld [vmem:[%s1 + $0x14] sm:$0xf]
  %v81 = vld [vmem:[%s1 + $0x18] sm:$0xf]
  %v82 = vld [vmem:[%s1 + $0x1c] sm:$0xf]
  %v83 = vld [vmem:[%s1 + $0x20] sm:$0xf]
  %v84 = vld [vmem:[%s1 + $0x24] sm:$0xf]
  %v85 = vld [vmem:[%s1 + $0x28] sm:$0xf]
  %v86 = vld [vmem:[%s1 + $0x2c] sm:$0xf]
  %v87 = vld [vmem:[%s1 + $0x30] sm:$0xf]
  %v88 = vld [vmem:[%s1 + $0x34] sm:$0xf]
  %v89 = vld [vmem:[%s1 + $0x38] sm:$0xf]
  %v90 = vld [vmem:[%s1 + $0x3c] sm:$0xf]
  %v107 = vunpack.c.l.b16 %v59
  %v108 = vunpack.c.l.b16 %v60
  %v109 = vunpack.c.l.b16 %v61
  %v110 = vunpack.c.l.b16 %v62
  %v111 = vunpack.c.l.b16 %v63
  %v112 = vunpack.c.l.b16 %v64
  %v113 = vunpack.c.l.b16 %v65
  %v114 = vunpack.c.l.b16 %v66
  %v115 = vunpack.c.l.b16 %v67
  %v116 = vunpack.c.l.b16 %v68
  %v117 = vunpack.c.l.b16 %v69
  %v118 = vunpack.c.l.b16 %v70
  %v119 = vunpack.c.l.b16 %v71
  %v120 = vunpack.c.l.b16 %v72
  %v121 = vunpack.c.l.b16 %v73
  %v122 = vunpack.c.l.b16 %v74
  %v123 = vpack.c.b16 %v108, %v107
  %v124 = vpack.c.b16 %v110, %v109
  %v125 = vpack.c.b16 %v112, %v111
  %v126 = vpack.c.b16 %v114, %v113
  %v127 = vpack.c.b16 %v116, %v115
  %v128 = vpack.c.b16 %v118, %v117
  %v129 = vpack.c.b16 %v120, %v119
  %v130 = vpack.c.b16 %v122, %v121
  %v155 = vunpack.c.l.b16 %v75
  %v156 = vunpack.c.l.b16 %v76
  %v157 = vunpack.c.l.b16 %v77
  %v158 = vunpack.c.l.b16 %v78
  %v159 = vunpack.c.l.b16 %v79
  %v160 = vunpack.c.l.b16 %v80
  %v161 = vunpack.c.l.b16 %v81
  %v162 = vunpack.c.l.b16 %v82
  %v163 = vunpack.c.l.b16 %v83
  %v164 = vunpack.c.l.b16 %v84
  %v165 = vunpack.c.l.b16 %v85
  %v166 = vunpack.c.l.b16 %v86
  %v167 = vunpack.c.l.b16 %v87
  %v168 = vunpack.c.l.b16 %v88
  %v169 = vunpack.c.l.b16 %v89
  %v170 = vunpack.c.l.b16 %v90
  %v171 = vpack.c.b16 %v156, %v155
  %v172 = vpack.c.b16 %v158, %v157
  %v173 = vpack.c.b16 %v160, %v159
  %v174 = vpack.c.b16 %v162, %v161
  %v175 = vpack.c.b16 %v164, %v163
  %v176 = vpack.c.b16 %v166, %v165
  %v177 = vpack.c.b16 %v168, %v167
  %v178 = vpack.c.b16 %v170, %v169
  %187 = vmatpush.bf16.msra.mxu0 %v178
  %188 = vmatpush.bf16.msra.mxu0 %v177
  %189 = vmatpush.bf16.msra.mxu0 %v176
  %190 = vmatpush.bf16.msra.mxu0 %v175
  %191 = vmatpush.bf16.msra.mxu0 %v174
  %192 = vmatpush.bf16.msra.mxu0 %v173
  %193 = vmatpush.bf16.msra.mxu0 %v172
  %194 = vmatpush.bf16.msra.mxu0 %v171
  %195 = vmatmul.bf16.gmra.mxu0 %v123
  %v196 = vpop.f32.mrf.mxu0
  %v197 = vadd.f32 0.0, %v196
  %v198 = vpop.f32.mrf.mxu0
  %v199 = vadd.f32 0.0, %v198
  %200 = vmatmul.bf16.gmra.mxu0 %v124
  %v201 = vpop.f32.mrf.mxu0
  %v202 = vadd.f32 0.0, %v201
  %v203 = vpop.f32.mrf.mxu0
  %v204 = vadd.f32 0.0, %v203
  %205 = vmatmul.bf16.gmra.mxu0 %v125
  %v206 = vpop.f32.mrf.mxu0
  %v207 = vadd.f32 0.0, %v206
  %v208 = vpop.f32.mrf.mxu0
  %v209 = vadd.f32 0.0, %v208
  %210 = vmatmul.bf16.gmra.mxu0 %v126
  %v211 = vpop.f32.mrf.mxu0
  %v212 = vadd.f32 0.0, %v211
  %v213 = vpop.f32.mrf.mxu0
  %v214 = vadd.f32 0.0, %v213
  %215 = vmatmul.bf16.gmra.mxu0 %v127
  %v216 = vpop.f32.mrf.mxu0
  %v217 = vadd.f32 0.0, %v216
  %v218 = vpop.f32.mrf.mxu0
  %v219 = vadd.f32 0.0, %v218
  %220 = vmatmul.bf16.gmra.mxu0 %v128
  %v221 = vpop.f32.mrf.mxu0
  %v222 = vadd.f32 0.0, %v221
  %v223 = vpop.f32.mrf.mxu0
  %v224 = vadd.f32 0.0, %v223
  %225 = vmatmul.bf16.gmra.mxu0 %v129
  %v226 = vpop.f32.mrf.mxu0
  %v227 = vadd.f32 0.0, %v226
  %v228 = vpop.f32.mrf.mxu0
  %v229 = vadd.f32 0.0, %v228
  %230 = vmatmul.bf16.gmra.mxu0 %v130
  %v231 = vpop.f32.mrf.mxu0
  %v232 = vadd.f32 0.0, %v231
  %v233 = vpop.f32.mrf.mxu0
  %v234 = vadd.f32 0.0, %v233
  %235 = vdwg.mxu0
  %v236 = vadd.f32 %v43, %v197
  %v237 = vadd.f32 %v44, %v199
  %v238 = vadd.f32 %v45, %v202
  %v239 = vadd.f32 %v46, %v204
  %v240 = vadd.f32 %v47, %v207
  %v241 = vadd.f32 %v48, %v209
  %v242 = vadd.f32 %v49, %v212
  %v243 = vadd.f32 %v50, %v214
  %v244 = vadd.f32 %v51, %v217
  %v245 = vadd.f32 %v52, %v219
  %v246 = vadd.f32 %v53, %v222
  %v247 = vadd.f32 %v54, %v224
  %v248 = vadd.f32 %v55, %v227
  %v249 = vadd.f32 %v56, %v229
  %v250 = vadd.f32 %v57, %v232
  %v251 = vadd.f32 %v58, %v234
  %252 = vst [vmem:[#allocation2] sm:$0xff] %v236
  %253 = vst [vmem:[#allocation2 + $0x8] sm:$0xff] %v237
  %254 = vst [vmem:[#allocation2 + $0x10] sm:$0xff] %v238
  %255 = vst [vmem:[#allocation2 + $0x18] sm:$0xff] %v239
  %256 = vst [vmem:[#allocation2 + $0x20] sm:$0xff] %v240
  %257 = vst [vmem:[#allocation2 + $0x28] sm:$0xff] %v241
  %258 = vst [vmem:[#allocation2 + $0x30] sm:$0xff] %v242
  %259 = vst [vmem:[#allocation2 + $0x38] sm:$0xff] %v243
  %260 = vst [vmem:[#allocation2 + $0x40] sm:$0xff] %v244
  %261 = vst [vmem:[#allocation2 + $0x48] sm:$0xff] %v245
  %262 = vst [vmem:[#allocation2 + $0x50] sm:$0xff] %v246
  %263 = vst [vmem:[#allocation2 + $0x58] sm:$0xff] %v247
  %264 = vst [vmem:[#allocation2 + $0x60] sm:$0xff] %v248
  %265 = vst [vmem:[#allocation2 + $0x68] sm:$0xff] %v249
  %266 = vst [vmem:[#allocation2 + $0x70] sm:$0xff] %v250
  %267 = vst [vmem:[#allocation2 + $0x78] sm:$0xff] %v251
  // Predicated region
  $region30: #{model_forward.5} parent=0 // pred_check
    %p268 = pneg %p23
  $region31: #{model_forward.5} parent=0 // pred_check_branch
    %270 = sbr.rel (%p268) target = $region33
  $region32: #{model_forward.5} parent=0 // pred_region
    %v271 = vld [vmem:[#allocation2] sm:$0xff]
    %v272 = vld [vmem:[#allocation2 + $0x8] sm:$0xff]
    %v273 = vld [vmem:[#allocation2 + $0x10] sm:$0xff]
    %v274 = vld [vmem:[#allocation2 + $0x18] sm:$0xff]
    %v275 = vld [vmem:[#allocation2 + $0x20] sm:$0xff]
    %v276 = vld [vmem:[#allocation2 + $0x28] sm:$0xff]
    %v277 = vld [vmem:[#allocation2 + $0x30] sm:$0xff]
    %v278 = vld [vmem:[#allocation2 + $0x38] sm:$0xff]
    %v279 = vld [vmem:[#allocation2 + $0x40] sm:$0xff]
    %v280 = vld [vmem:[#allocation2 + $0x48] sm:$0xff]
    %v281 = vld [vmem:[#allocation2 + $0x50] sm:$0xff]
    %v282 = vld [vmem:[#allocation2 + $0x58] sm:$0xff]
    %v283 = vld [vmem:[#allocation2 + $0x60] sm:$0xff]
    %v284 = vld [vmem:[#allocation2 + $0x68] sm:$0xff]
    %v285 = vld [vmem:[#allocation2 + $0x70] sm:$0xff]
    %v286 = vld [vmem:[#allocation2 + $0x78] sm:$0xff]
    %v287 = vpack.c.bf16 %v272, %v271
    %v288 = vpack.c.bf16 %v274, %v273
    %v289 = vpack.c.bf16 %v276, %v275
    %v290 = vpack.c.bf16 %v278, %v277
    %v291 = vpack.c.bf16 %v280, %v279
    %v292 = vpack.c.bf16 %v282, %v281
    %v293 = vpack.c.bf16 %v284, %v283
    %v294 = vpack.c.bf16 %v286, %v285
    %v295 = vld [vmem:[%s3] sm:$0xf]
    %v296 = vld [vmem:[%s3 + $0x4] sm:$0xf]
    %v297 = vld [vmem:[%s3 + $0x8] sm:$0xf]
    %v298 = vld [vmem:[%s3 + $0xc] sm:$0xf]
    %v299 = vld [vmem:[%s3 + $0x10] sm:$0xf]
    %v300 = vld [vmem:[%s3 + $0x14] sm:$0xf]
    %v301 = vld [vmem:[%s3 + $0x18] sm:$0xf]
    %v302 = vld [vmem:[%s3 + $0x1c] sm:$0xf]
    %v303 = vld [vmem:[%s3 + $0x20] sm:$0xf]
    %v304 = vld [vmem:[%s3 + $0x24] sm:$0xf]
    %v305 = vld [vmem:[%s3 + $0x28] sm:$0xf]
    %v306 = vld [vmem:[%s3 + $0x2c] sm:$0xf]
    %v307 = vld [vmem:[%s3 + $0x30] sm:$0xf]
    %v308 = vld [vmem:[%s3 + $0x34] sm:$0xf]
    %v309 = vld [vmem:[%s3 + $0x38] sm:$0xf]
    %v310 = vld [vmem:[%s3 + $0x3c] sm:$0xf]
    %v311 = vld [vmem:[%s4] sm:$0x1]
    %v313 = vperm.slane %v311, 0
    %v331 = vunpack.c.l.b16 %v295
    %v332 = vunpack.c.l.b16 %v296
    %v333 = vunpack.c.l.b16 %v297
    %v334 = vunpack.c.l.b16 %v298
    %v335 = vunpack.c.l.b16 %v299
    %v336 = vunpack.c.l.b16 %v300
    %v337 = vunpack.c.l.b16 %v301
    %v338 = vunpack.c.l.b16 %v302
    %v339 = vunpack.c.l.b16 %v303
    %v340 = vunpack.c.l.b16 %v304
    %v341 = vunpack.c.l.b16 %v305
    %v342 = vunpack.c.l.b16 %v306
    %v343 = vunpack.c.l.b16 %v307
    %v344 = vunpack.c.l.b16 %v308
    %v345 = vunpack.c.l.b16 %v309
    %v346 = vunpack.c.l.b16 %v310
    %v347 = vpack.c.b16 %v332, %v331
    %v348 = vpack.c.b16 %v334, %v333
    %v349 = vpack.c.b16 %v336, %v335
    %v350 = vpack.c.b16 %v338, %v337
    %v351 = vpack.c.b16 %v340, %v339
    %v352 = vpack.c.b16 %v342, %v341
    %v353 = vpack.c.b16 %v344, %v343
    %v354 = vpack.c.b16 %v346, %v345
    %363 = vmatpush.bf16.msra.mxu0 %v354
    %364 = vmatpush.bf16.msra.mxu0 %v353
    %365 = vmatpush.bf16.msra.mxu0 %v352
    %366 = vmatpush.bf16.msra.mxu0 %v351
    %367 = vmatpush.bf16.msra.mxu0 %v350
    %368 = vmatpush.bf16.msra.mxu0 %v349
    %369 = vmatpush.bf16.msra.mxu0 %v348
    %370 = vmatpush.bf16.msra.mxu0 %v347
    %371 = vmatmul.bf16.gmra.mxu0 %v287
    %v372 = vpop.f32.mrf.mxu0
    %v373 = vadd.f32 %v313, %v372
    %v374 = vpop.f32.mrf.mxu0
    %v375 = vadd.f32 %v313, %v374
    %376 = vmatmul.bf16.gmra.mxu0 %v288
    %v377 = vpop.f32.mrf.mxu0
    %v378 = vadd.f32 %v313, %v377
    %v379 = vpop.f32.mrf.mxu0
    %v380 = vadd.f32 %v313, %v379
    %381 = vmatmul.bf16.gmra.mxu0 %v289
    %v382 = vpop.f32.mrf.mxu0
    %v383 = vadd.f32 %v313, %v382
    %v384 = vpop.f32.mrf.mxu0
    %v385 = vadd.f32 %v313, %v384
    %386 = vmatmul.bf16.gmra.mxu0 %v290
    %v387 = vpop.f32.mrf.mxu0
    %v388 = vadd.f32 %v313, %v387
    %v389 = vpop.f32.mrf.mxu0
    %v390 = vadd.f32 %v313, %v389
    %391 = vmatmul.bf16.gmra.mxu0 %v291
    %v392 = vpop.f32.mrf.mxu0
    %v393 = vadd.f32 %v313, %v392
    %v394 = vpop.f32.mrf.mxu0
    %v395 = vadd.f32 %v313, %v394
    %396 = vmatmul.bf16.gmra.mxu0 %v292
    %v397 = vpop.f32.mrf.mxu0
    %v398 = vadd.f32 %v313, %v397
    %v399 = vpop.f32.mrf.mxu0
    %v400 = vadd.f32 %v313, %v399
    %401 = vmatmul.bf16.gmra.mxu0 %v293
    %v402 = vpop.f32.mrf.mxu0
    %v403 = vadd.f32 %v313, %v402
    %v404 = vpop.f32.mrf.mxu0
    %v405 = vadd.f32 %v313, %v404
    %406 = vmatmul.bf16.gmra.mxu0 %v294
    %v407 = vpop.f32.mrf.mxu0
    %v408 = vadd.f32 %v313, %v407
    %v409 = vpop.f32.mrf.mxu0
    %v410 = vadd.f32 %v313, %v409
    %411 = vdwg.mxu0
    %v412 = vld [vmem:[%s2] sm:$0xf]
    %v413 = vld [vmem:[%s2 + $0x4] sm:$0xf]
    %v414 = vld [vmem:[%s2 + $0x8] sm:$0xf]
    %v415 = vld [vmem:[%s2 + $0xc] sm:$0xf]
    %v416 = vld [vmem:[%s2 + $0x10] sm:$0xf]
    %v417 = vld [vmem:[%s2 + $0x14] sm:$0xf]
    %v418 = vld [vmem:[%s2 + $0x18] sm:$0xf]
    %v419 = vld [vmem:[%s2 + $0x1c] sm:$0xf]
    %v420 = vld [vmem:[%s2 + $0x20] sm:$0xf]
    %v421 = vld [vmem:[%s2 + $0x24] sm:$0xf]
    %v422 = vld [vmem:[%s2 + $0x28] sm:$0xf]
    %v423 = vld [vmem:[%s2 + $0x2c] sm:$0xf]
    %v424 = vld [vmem:[%s2 + $0x30] sm:$0xf]
    %v425 = vld [vmem:[%s2 + $0x34] sm:$0xf]
    %v426 = vld [vmem:[%s2 + $0x38] sm:$0xf]
    %v427 = vld [vmem:[%s2 + $0x3c] sm:$0xf]
    %v428 = vld [vmem:[%s5] sm:$0xf]
    %v429 = vld [vmem:[%s5 + $0x4] sm:$0xf]
    %v430 = vld [vmem:[%s5 + $0x8] sm:$0xf]
    %v431 = vld [vmem:[%s5 + $0xc] sm:$0xf]
    %v432 = vld [vmem:[%s5 + $0x10] sm:$0xf]
    %v433 = vld [vmem:[%s5 + $0x14] sm:$0xf]
    %v434 = vld [vmem:[%s5 + $0x18] sm:$0xf]
    %v435 = vld [vmem:[%s5 + $0x1c] sm:$0xf]
    %v436 = vld [vmem:[%s5 + $0x20] sm:$0xf]
    %v437 = vld [vmem:[%s5 + $0x24] sm:$0xf]
    %v438 = vld [vmem:[%s5 + $0x28] sm:$0xf]
    %v439 = vld [vmem:[%s5 + $0x2c] sm:$0xf]
    %v440 = vld [vmem:[%s5 + $0x30] sm:$0xf]
    %v441 = vld [vmem:[%s5 + $0x34] sm:$0xf]
    %v442 = vld [vmem:[%s5 + $0x38] sm:$0xf]
    %v443 = vld [vmem:[%s5 + $0x3c] sm:$0xf]
    %v460 = vunpack.c.l.b16 %v412
    %v461 = vunpack.c.l.b16 %v413
    %v462 = vunpack.c.l.b16 %v414
    %v463 = vunpack.c.l.b16 %v415
    %v464 = vunpack.c.l.b16 %v416
    %v465 = vunpack.c.l.b16 %v417
    %v466 = vunpack.c.l.b16 %v418
    %v467 = vunpack.c.l.b16 %v419
    %v468 = vunpack.c.l.b16 %v420
    %v469 = vunpack.c.l.b16 %v421
    %v470 = vunpack.c.l.b16 %v422
    %v471 = vunpack.c.l.b16 %v423
    %v472 = vunpack.c.l.b16 %v424
    %v473 = vunpack.c.l.b16 %v425
    %v474 = vunpack.c.l.b16 %v426
    %v475 = vunpack.c.l.b16 %v427
    %v476 = vpack.c.b16 %v461, %v460
    %v477 = vpack.c.b16 %v463, %v462
    %v478 = vpack.c.b16 %v465, %v464
    %v479 = vpack.c.b16 %v467, %v466
    %v480 = vpack.c.b16 %v469, %v468
    %v481 = vpack.c.b16 %v471, %v470
    %v482 = vpack.c.b16 %v473, %v472
    %v483 = vpack.c.b16 %v475, %v474
    %v508 = vunpack.c.l.b16 %v428
    %v509 = vunpack.c.l.b16 %v429
    %v510 = vunpack.c.l.b16 %v430
    %v511 = vunpack.c.l.b16 %v431
    %v512 = vunpack.c.l.b16 %v432
    %v513 = vunpack.c.l.b16 %v433
    %v514 = vunpack.c.l.b16 %v434
    %v515 = vunpack.c.l.b16 %v435
    %v516 = vunpack.c.l.b16 %v436
    %v517 = vunpack.c.l.b16 %v437
    %v518 = vunpack.c.l.b16 %v438
    %v519 = vunpack.c.l.b16 %v439
    %v520 = vunpack.c.l.b16 %v440
    %v521 = vunpack.c.l.b16 %v441
    %v522 = vunpack.c.l.b16 %v442
    %v523 = vunpack.c.l.b16 %v443
    %v524 = vpack.c.b16 %v509, %v508
    %v525 = vpack.c.b16 %v511, %v510
    %v526 = vpack.c.b16 %v513, %v512
    %v527 = vpack.c.b16 %v515, %v514
    %v528 = vpack.c.b16 %v517, %v516
    %v529 = vpack.c.b16 %v519, %v518
    %v530 = vpack.c.b16 %v521, %v520
    %v531 = vpack.c.b16 %v523, %v522
    %540 = vmatpush.bf16.msra.mxu0 %v531
    %541 = vmatpush.bf16.msra.mxu0 %v530
    %542 = vmatpush.bf16.msra.mxu0 %v529
    %543 = vmatpush.bf16.msra.mxu0 %v528
    %544 = vmatpush.bf16.msra.mxu0 %v527
    %545 = vmatpush.bf16.msra.mxu0 %v526
    %546 = vmatpush.bf16.msra.mxu0 %v525
    %547 = vmatpush.bf16.msra.mxu0 %v524
    %548 = vmatmul.bf16.gmra.mxu0 %v476
    %v549 = vpop.f32.mrf.mxu0
    %v550 = vadd.f32 0.0, %v549
    %v551 = vpop.f32.mrf.mxu0
    %v552 = vadd.f32 0.0, %v551
    %553 = vmatmul.bf16.gmra.mxu0 %v477
    %v554 = vpop.f32.mrf.mxu0
    %v555 = vadd.f32 0.0, %v554
    %v556 = vpop.f32.mrf.mxu0
    %v557 = vadd.f32 0.0, %v556
    %558 = vmatmul.bf16.gmra.mxu0 %v478
    %v559 = vpop.f32.mrf.mxu0
    %v560 = vadd.f32 0.0, %v559
    %v561 = vpop.f32.mrf.mxu0
    %v562 = vadd.f32 0.0, %v561
    %563 = vmatmul.bf16.gmra.mxu0 %v479
    %v564 = vpop.f32.mrf.mxu0
    %v565 = vadd.f32 0.0, %v564
    %v566 = vpop.f32.mrf.mxu0
    %v567 = vadd.f32 0.0, %v566
    %568 = vmatmul.bf16.gmra.mxu0 %v480
    %v569 = vpop.f32.mrf.mxu0
    %v570 = vadd.f32 0.0, %v569
    %v571 = vpop.f32.mrf.mxu0
    %v572 = vadd.f32 0.0, %v571
    %573 = vmatmul.bf16.gmra.mxu0 %v481
    %v574 = vpop.f32.mrf.mxu0
    %v575 = vadd.f32 0.0, %v574
    %v576 = vpop.f32.mrf.mxu0
    %v577 = vadd.f32 0.0, %v576
    %578 = vmatmul.bf16.gmra.mxu0 %v482
    %v579 = vpop.f32.mrf.mxu0
    %v580 = vadd.f32 0.0, %v579
    %v581 = vpop.f32.mrf.mxu0
    %v582 = vadd.f32 0.0, %v581
    %583 = vmatmul.bf16.gmra.mxu0 %v483
    %v584 = vpop.f32.mrf.mxu0
    %v585 = vadd.f32 0.0, %v584
    %v586 = vpop.f32.mrf.mxu0
    %v587 = vadd.f32 0.0, %v586
    %588 = vdwg.mxu0
    %v589 = vadd.f32 %v373, %v550
    %v590 = vadd.f32 %v375, %v552
    %v591 = vadd.f32 %v378, %v555
    %v592 = vadd.f32 %v380, %v557
    %v593 = vadd.f32 %v383, %v560
    %v594 = vadd.f32 %v385, %v562
    %v595 = vadd.f32 %v388, %v565
    %v596 = vadd.f32 %v390, %v567
    %v597 = vadd.f32 %v393, %v570
    %v598 = vadd.f32 %v395, %v572
    %v599 = vadd.f32 %v398, %v575
    %v600 = vadd.f32 %v400, %v577
    %v601 = vadd.f32 %v403, %v580
    %v602 = vadd.f32 %v405, %v582
    %v603 = vadd.f32 %v408, %v585
    %v604 = vadd.f32 %v410, %v587
    %v605 = vmax.f32 %v589, 0.0
    %v606 = vmax.f32 %v590, 0.0
    %v607 = vmax.f32 %v591, 0.0
    %v608 = vmax.f32 %v592, 0.0
    %v609 = vmax.f32 %v593, 0.0
    %v610 = vmax.f32 %v594, 0.0
    %v611 = vmax.f32 %v595, 0.0
    %v612 = vmax.f32 %v596, 0.0
    %v613 = vmax.f32 %v597, 0.0
    %v614 = vmax.f32 %v598, 0.0
    %v615 = vmax.f32 %v599, 0.0
    %v616 = vmax.f32 %v600, 0.0
    %v617 = vmax.f32 %v601, 0.0
    %v618 = vmax.f32 %v602, 0.0
    %v619 = vmax.f32 %v603, 0.0
    %v620 = vmax.f32 %v604, 0.0
    %v621 = vpack.c.bf16 %v605, %v605
    %v622 = vpack.c.bf16 %v606, %v606
    %v623 = vpack.c.bf16 %v607, %v607
    %v624 = vpack.c.bf16 %v608, %v608
    %v625 = vpack.c.bf16 %v609, %v609
    %v626 = vpack.c.bf16 %v610, %v610
    %v627 = vpack.c.bf16 %v611, %v611
    %v628 = vpack.c.bf16 %v612, %v612
    %v629 = vpack.c.bf16 %v613, %v613
    %v630 = vpack.c.bf16 %v614, %v614
    %v631 = vpack.c.bf16 %v615, %v615
    %v632 = vpack.c.bf16 %v616, %v616
    %v633 = vpack.c.bf16 %v617, %v617
    %v634 = vpack.c.bf16 %v618, %v618
    %v635 = vpack.c.bf16 %v619, %v619
    %v636 = vpack.c.bf16 %v620, %v620
    %637 = vst [vmem:[%s6] sm:$0xf] %v621
    %638 = vst [vmem:[%s6 + $0x4] sm:$0xf] %v622
    %639 = vst [vmem:[%s6 + $0x8] sm:$0xf] %v623
    %640 = vst [vmem:[%s6 + $0xc] sm:$0xf] %v624
    %641 = vst [vmem:[%s6 + $0x10] sm:$0xf] %v625
    %642 = vst [vmem:[%s6 + $0x14] sm:$0xf] %v626
    %643 = vst [vmem:[%s6 + $0x18] sm:$0xf] %v627
    %644 = vst [vmem:[%s6 + $0x1c] sm:$0xf] %v628
    %645 = vst [vmem:[%s6 + $0x20] sm:$0xf] %v629
    %646 = vst [vmem:[%s6 + $0x24] sm:$0xf] %v630
    %647 = vst [vmem:[%s6 + $0x28] sm:$0xf] %v631
    %648 = vst [vmem:[%s6 + $0x2c] sm:$0xf] %v632
    %649 = vst [vmem:[%s6 + $0x30] sm:$0xf] %v633
    %650 = vst [vmem:[%s6 + $0x34] sm:$0xf] %v634
    %651 = vst [vmem:[%s6 + $0x38] sm:$0xf] %v635
    %652 = vst [vmem:[%s6 + $0x3c] sm:$0xf] %v636
  $region33: #{model_forward.5} parent=0 // pred_fallthru
    _
  // Predicated region
  $region34: #{model_forward.5} parent=0 // pred_check
    _
  $region35: #{model_forward.5} parent=0 // pred_check_branch
    %654 = sbr.rel (0) target = $region37
  $region36: #{model_forward.5} parent=0 // pred_region
    _
  $region37: #{model_forward.5} parent=0 // pred_fallthru
    _
  // Predicated region
  $region38: #{model_forward.5} parent=0 // pred_check
    _
  $region39: #{model_forward.5} parent=0 // pred_check_branch
    %656 = sbr.rel (0) target = $region41
  $region40: #{model_forward.5} parent=0 // pred_region
    _
  $region41: #{model_forward.5} parent=0 // pred_fallthru
    _

// kernel: model_forward.9
$region0: #{model_forward.9}
  #allocation0 [shape = 'u32[]', space=smem, size = 0x4, offset = 0x4, fixed_abs, tag = 'smem constant byte address 0x4 - core index']
  #allocation1 [shape = 'u32[72,128]{1,0:T(1,128)}', space=vmem, size = 0x9000, scoped, tag = 'internal scratch']
  %s0 = inlined_call_operand.vmem [shape: bf16[128,128], index: 0, kind: input, shape index: {}]
  %s1 = inlined_call_operand.vmem [shape: bf16[128,128], index: 1, kind: input, shape index: {}]
  %s2 = inlined_call_operand.vmem [shape: bf16[128,128], index: 2, kind: input, shape index: {}]
  %s3 = inlined_call_operand.vmem [shape: bf16[128,128], index: 3, kind: input, shape index: {}]
  %s4 = inlined_call_operand.vmem [shape: f32[1,128], index: 4, kind: input, shape index: {}]
  %s5 = inlined_call_operand.vmem [shape: bf16[128,128], index: 5, kind: input, shape index: {}]
  %s6 = inlined_call_operand.vmem [shape: f32[1,128], index: 6, kind: input, shape index: {}]
  %s7 = inlined_call_operand.vmem [shape: bf16[128,128], index: 7, kind: output, shape index: {}]
  %s8 = sld [smem:[#allocation0]]
  $region38: #{model_forward.9} parent=0
    _
  %s10 = ssub.s32 1, %s8
  %s11 = scalar_select 0, %s10, %s8
  // Predicated region
  $region2: #{model_forward.9} parent=0 // pred_check
    _
  $region3: #{model_forward.9} parent=0 // pred_check_branch
    %13 = sbr.rel (0) target = $region5
  $region4: #{model_forward.9} parent=0 // pred_region
    _
  $region5: #{model_forward.9} parent=0 // pred_fallthru
    _
  // Predicated region
  $region6: #{model_forward.9} parent=0 // pred_check
    _
  $region7: #{model_forward.9} parent=0 // pred_check_branch
    %15 = sbr.rel (0) target = $region9
  $region8: #{model_forward.9} parent=0 // pred_region
    _
  $region9: #{model_forward.9} parent=0 // pred_fallthru
    _
  // Predicated region
  $region10: #{model_forward.9} parent=0 // pred_check
    _
  $region11: #{model_forward.9} parent=0 // pred_check_branch
    %17 = sbr.rel (0) target = $region13
  $region12: #{model_forward.9} parent=0 // pred_region
    _
  $region13: #{model_forward.9} parent=0 // pred_fallthru
    _
  // Predicated region
  $region14: #{model_forward.9} parent=0 // pred_check
    _
  $region15: #{model_forward.9} parent=0 // pred_check_branch
    %19 = sbr.rel (0) target = $region17
  $region16: #{model_forward.9} parent=0 // pred_region
    _
  $region17: #{model_forward.9} parent=0 // pred_fallthru
    _
  // Predicated region
  $region18: #{model_forward.9} parent=0 // pred_check
    _
  $region19: #{model_forward.9} parent=0 // pred_check_branch
    %21 = sbr.rel (0) target = $region21
  $region20: #{model_forward.9} parent=0 // pred_region
    _
  $region21: #{model_forward.9} parent=0 // pred_fallthru
    _
  // Predicated region
  $region22: #{model_forward.9} parent=0 // pred_check
    _
  $region23: #{model_forward.9} parent=0 // pred_check_branch
    %23 = sbr.rel (0) target = $region25
  $region24: #{model_forward.9} parent=0 // pred_region
    _
  $region25: #{model_forward.9} parent=0 // pred_fallthru
    _
  // Predicated region
  $region26: #{model_forward.9} parent=0 // pred_check
    _
  $region27: #{model_forward.9} parent=0 // pred_check_branch
    %25 = sbr.rel (0) target = $region29
  $region28: #{model_forward.9} parent=0 // pred_region
    _
  $region29: #{model_forward.9} parent=0 // pred_fallthru
    _
  %v26 = vld [vmem:[%s0] sm:$0xf]
  %v27 = vld [vmem:[%s0 + $0x4] sm:$0xf]
  %v28 = vld [vmem:[%s0 + $0x8] sm:$0xf]
  %v29 = vld [vmem:[%s0 + $0xc] sm:$0xf]
  %v30 = vld [vmem:[%s0 + $0x10] sm:$0xf]
  %v31 = vld [vmem:[%s0 + $0x14] sm:$0xf]
  %v32 = vld [vmem:[%s0 + $0x18] sm:$0xf]
  %v33 = vld [vmem:[%s0 + $0x1c] sm:$0xf]
  %v34 = vld [vmem:[%s0 + $0x20] sm:$0xf]
  %v35 = vld [vmem:[%s0 + $0x24] sm:$0xf]
  %v36 = vld [vmem:[%s0 + $0x28] sm:$0xf]
  %v37 = vld [vmem:[%s0 + $0x2c] sm:$0xf]
  %v38 = vld [vmem:[%s0 + $0x30] sm:$0xf]
  %v39 = vld [vmem:[%s0 + $0x34] sm:$0xf]
  %v40 = vld [vmem:[%s0 + $0x38] sm:$0xf]
  %v41 = vld [vmem:[%s0 + $0x3c] sm:$0xf]
  %v42 = vld [vmem:[%s2] sm:$0xf]
  %v43 = vld [vmem:[%s2 + $0x4] sm:$0xf]
  %v44 = vld [vmem:[%s2 + $0x8] sm:$0xf]
  %v45 = vld [vmem:[%s2 + $0xc] sm:$0xf]
  %v46 = vld [vmem:[%s2 + $0x10] sm:$0xf]
  %v47 = vld [vmem:[%s2 + $0x14] sm:$0xf]
  %v48 = vld [vmem:[%s2 + $0x18] sm:$0xf]
  %v49 = vld [vmem:[%s2 + $0x1c] sm:$0xf]
  %v50 = vld [vmem:[%s2 + $0x20] sm:$0xf]
  %v51 = vld [vmem:[%s2 + $0x24] sm:$0xf]
  %v52 = vld [vmem:[%s2 + $0x28] sm:$0xf]
  %v53 = vld [vmem:[%s2 + $0x2c] sm:$0xf]
  %v54 = vld [vmem:[%s2 + $0x30] sm:$0xf]
  %v55 = vld [vmem:[%s2 + $0x34] sm:$0xf]
  %v56 = vld [vmem:[%s2 + $0x38] sm:$0xf]
  %v57 = vld [vmem:[%s2 + $0x3c] sm:$0xf]
  %v58 = vld [vmem:[%s1] sm:$0xf]
  %v59 = vld [vmem:[%s1 + $0x4] sm:$0xf]
  %v60 = vld [vmem:[%s1 + $0x8] sm:$0xf]
  %v61 = vld [vmem:[%s1 + $0xc] sm:$0xf]
  %v62 = vld [vmem:[%s1 + $0x10] sm:$0xf]
  %v63 = vld [vmem:[%s1 + $0x14] sm:$0xf]
  %v64 = vld [vmem:[%s1 + $0x18] sm:$0xf]
  %v65 = vld [vmem:[%s1 + $0x1c] sm:$0xf]
  %v66 = vld [vmem:[%s1 + $0x20] sm:$0xf]
  %v67 = vld [vmem:[%s1 + $0x24] sm:$0xf]
  %v68 = vld [vmem:[%s1 + $0x28] sm:$0xf]
  %v69 = vld [vmem:[%s1 + $0x2c] sm:$0xf]
  %v70 = vld [vmem:[%s1 + $0x30] sm:$0xf]
  %v71 = vld [vmem:[%s1 + $0x34] sm:$0xf]
  %v72 = vld [vmem:[%s1 + $0x38] sm:$0xf]
  %v73 = vld [vmem:[%s1 + $0x3c] sm:$0xf]
  %v74 = vld [vmem:[%s3] sm:$0xf]
  %v75 = vld [vmem:[%s3 + $0x4] sm:$0xf]
  %v76 = vld [vmem:[%s3 + $0x8] sm:$0xf]
  %v77 = vld [vmem:[%s3 + $0xc] sm:$0xf]
  %v78 = vld [vmem:[%s3 + $0x10] sm:$0xf]
  %v79 = vld [vmem:[%s3 + $0x14] sm:$0xf]
  %v80 = vld [vmem:[%s3 + $0x18] sm:$0xf]
  %v81 = vld [vmem:[%s3 + $0x1c] sm:$0xf]
  %v82 = vld [vmem:[%s3 + $0x20] sm:$0xf]
  %v83 = vld [vmem:[%s3 + $0x24] sm:$0xf]
  %v84 = vld [vmem:[%s3 + $0x28] sm:$0xf]
  %v85 = vld [vmem:[%s3 + $0x2c] sm:$0xf]
  %v86 = vld [vmem:[%s3 + $0x30] sm:$0xf]
  %v87 = vld [vmem:[%s3 + $0x34] sm:$0xf]
  %v88 = vld [vmem:[%s3 + $0x38] sm:$0xf]
  %v89 = vld [vmem:[%s3 + $0x3c] sm:$0xf]
  %v106 = vunpack.c.l.b16 %v58
  %v107 = vunpack.c.l.b16 %v59
  %v108 = vunpack.c.l.b16 %v60
  %v109 = vunpack.c.l.b16 %v61
  %v110 = vunpack.c.l.b16 %v62
  %v111 = vunpack.c.l.b16 %v63
  %v112 = vunpack.c.l.b16 %v64
  %v113 = vunpack.c.l.b16 %v65
  %v114 = vunpack.c.l.b16 %v66
  %v115 = vunpack.c.l.b16 %v67
  %v116 = vunpack.c.l.b16 %v68
  %v117 = vunpack.c.l.b16 %v69
  %v118 = vunpack.c.l.b16 %v70
  %v119 = vunpack.c.l.b16 %v71
  %v120 = vunpack.c.l.b16 %v72
  %v121 = vunpack.c.l.b16 %v73
  %v122 = vpack.c.b16 %v107, %v106
  %v123 = vpack.c.b16 %v109, %v108
  %v124 = vpack.c.b16 %v111, %v110
  %v125 = vpack.c.b16 %v113, %v112
  %v126 = vpack.c.b16 %v115, %v114
  %v127 = vpack.c.b16 %v117, %v116
  %v128 = vpack.c.b16 %v119, %v118
  %v129 = vpack.c.b16 %v121, %v120
  %v154 = vunpack.c.l.b16 %v74
  %v155 = vunpack.c.l.b16 %v75
  %v156 = vunpack.c.l.b16 %v76
  %v157 = vunpack.c.l.b16 %v77
  %v158 = vunpack.c.l.b16 %v78
  %v159 = vunpack.c.l.b16 %v79
  %v160 = vunpack.c.l.b16 %v80
  %v161 = vunpack.c.l.b16 %v81
  %v162 = vunpack.c.l.b16 %v82
  %v163 = vunpack.c.l.b16 %v83
  %v164 = vunpack.c.l.b16 %v84
  %v165 = vunpack.c.l.b16 %v85
  %v166 = vunpack.c.l.b16 %v86
  %v167 = vunpack.c.l.b16 %v87
  %v168 = vunpack.c.l.b16 %v88
  %v169 = vunpack.c.l.b16 %v89
  %v170 = vpack.c.b16 %v155, %v154
  %v171 = vpack.c.b16 %v157, %v156
  %v172 = vpack.c.b16 %v159, %v158
  %v173 = vpack.c.b16 %v161, %v160
  %v174 = vpack.c.b16 %v163, %v162
  %v175 = vpack.c.b16 %v165, %v164
  %v176 = vpack.c.b16 %v167, %v166
  %v177 = vpack.c.b16 %v169, %v168
  %186 = vmatpush.bf16.msra.mxu0 %v177
  %187 = vmatpush.bf16.msra.mxu0 %v176
  %188 = vmatpush.bf16.msra.mxu0 %v175
  %189 = vmatpush.bf16.msra.mxu0 %v174
  %190 = vmatpush.bf16.msra.mxu0 %v173
  %191 = vmatpush.bf16.msra.mxu0 %v172
  %192 = vmatpush.bf16.msra.mxu0 %v171
  %193 = vmatpush.bf16.msra.mxu0 %v170
  %194 = vmatmul.bf16.gmra.mxu0 %v122
  %v195 = vpop.f32.mrf.mxu0
  %v196 = vadd.f32 0.0, %v195
  %v197 = vpop.f32.mrf.mxu0
  %v198 = vadd.f32 0.0, %v197
  %199 = vmatmul.bf16.gmra.mxu0 %v123
  %v200 = vpop.f32.mrf.mxu0
  %v201 = vadd.f32 0.0, %v200
  %v202 = vpop.f32.mrf.mxu0
  %v203 = vadd.f32 0.0, %v202
  %204 = vmatmul.bf16.gmra.mxu0 %v124
  %v205 = vpop.f32.mrf.mxu0
  %v206 = vadd.f32 0.0, %v205
  %v207 = vpop.f32.mrf.mxu0
  %v208 = vadd.f32 0.0, %v207
  %209 = vmatmul.bf16.gmra.mxu0 %v125
  %v210 = vpop.f32.mrf.mxu0
  %v211 = vadd.f32 0.0, %v210
  %v212 = vpop.f32.mrf.mxu0
  %v213 = vadd.f32 0.0, %v212
  %214 = vmatmul.bf16.gmra.mxu0 %v126
  %v215 = vpop.f32.mrf.mxu0
  %v216 = vadd.f32 0.0, %v215
  %v217 = vpop.f32.mrf.mxu0
  %v218 = vadd.f32 0.0, %v217
  %219 = vmatmul.bf16.gmra.mxu0 %v127
  %v220 = vpop.f32.mrf.mxu0
  %v221 = vadd.f32 0.0, %v220
  %v222 = vpop.f32.mrf.mxu0
  %v223 = vadd.f32 0.0, %v222
  %224 = vmatmul.bf16.gmra.mxu0 %v128
  %v225 = vpop.f32.mrf.mxu0
  %v226 = vadd.f32 0.0, %v225
  %v227 = vpop.f32.mrf.mxu0
  %v228 = vadd.f32 0.0, %v227
  %229 = vmatmul.bf16.gmra.mxu0 %v129
  %v230 = vpop.f32.mrf.mxu0
  %v231 = vadd.f32 0.0, %v230
  %v232 = vpop.f32.mrf.mxu0
  %v233 = vadd.f32 0.0, %v232
  %234 = vdwg.mxu0
  %v251 = vunpack.c.l.b16 %v26
  %v252 = vunpack.c.l.b16 %v27
  %v253 = vunpack.c.l.b16 %v28
  %v254 = vunpack.c.l.b16 %v29
  %v255 = vunpack.c.l.b16 %v30
  %v256 = vunpack.c.l.b16 %v31
  %v257 = vunpack.c.l.b16 %v32
  %v258 = vunpack.c.l.b16 %v33
  %v259 = vunpack.c.l.b16 %v34
  %v260 = vunpack.c.l.b16 %v35
  %v261 = vunpack.c.l.b16 %v36
  %v262 = vunpack.c.l.b16 %v37
  %v263 = vunpack.c.l.b16 %v38
  %v264 = vunpack.c.l.b16 %v39
  %v265 = vunpack.c.l.b16 %v40
  %v266 = vunpack.c.l.b16 %v41
  %v267 = vpack.c.b16 %v252, %v251
  %v268 = vpack.c.b16 %v254, %v253
  %v269 = vpack.c.b16 %v256, %v255
  %v270 = vpack.c.b16 %v258, %v257
  %v271 = vpack.c.b16 %v260, %v259
  %v272 = vpack.c.b16 %v262, %v261
  %v273 = vpack.c.b16 %v264, %v263
  %v274 = vpack.c.b16 %v266, %v265
  %v299 = vunpack.c.l.b16 %v42
  %v300 = vunpack.c.l.b16 %v43
  %v301 = vunpack.c.l.b16 %v44
  %v302 = vunpack.c.l.b16 %v45
  %v303 = vunpack.c.l.b16 %v46
  %v304 = vunpack.c.l.b16 %v47
  %v305 = vunpack.c.l.b16 %v48
  %v306 = vunpack.c.l.b16 %v49
  %v307 = vunpack.c.l.b16 %v50
  %v308 = vunpack.c.l.b16 %v51
  %v309 = vunpack.c.l.b16 %v52
  %v310 = vunpack.c.l.b16 %v53
  %v311 = vunpack.c.l.b16 %v54
  %v312 = vunpack.c.l.b16 %v55
  %v313 = vunpack.c.l.b16 %v56
  %v314 = vunpack.c.l.b16 %v57
  %v315 = vpack.c.b16 %v300, %v299
  %v316 = vpack.c.b16 %v302, %v301
  %v317 = vpack.c.b16 %v304, %v303
  %v318 = vpack.c.b16 %v306, %v305
  %v319 = vpack.c.b16 %v308, %v307
  %v320 = vpack.c.b16 %v310, %v309
  %v321 = vpack.c.b16 %v312, %v311
  %v322 = vpack.c.b16 %v314, %v313
  %331 = vmatpush.bf16.msra.mxu0 %v322
  %332 = vmatpush.bf16.msra.mxu0 %v321
  %333 = vmatpush.bf16.msra.mxu0 %v320
  %334 = vmatpush.bf16.msra.mxu0 %v319
  %335 = vmatpush.bf16.msra.mxu0 %v318
  %336 = vmatpush.bf16.msra.mxu0 %v317
  %337 = vmatpush.bf16.msra.mxu0 %v316
  %338 = vmatpush.bf16.msra.mxu0 %v315
  %339 = vmatmul.bf16.gmra.mxu0 %v267
  %v340 = vpop.f32.mrf.mxu0
  %v341 = vadd.f32 %v196, %v340
  %v342 = vpop.f32.mrf.mxu0
  %v343 = vadd.f32 %v198, %v342
  %344 = vmatmul.bf16.gmra.mxu0 %v268
  %v345 = vpop.f32.mrf.mxu0
  %v346 = vadd.f32 %v201, %v345
  %v347 = vpop.f32.mrf.mxu0
  %v348 = vadd.f32 %v203, %v347
  %349 = vmatmul.bf16.gmra.mxu0 %v269
  %v350 = vpop.f32.mrf.mxu0
  %v351 = vadd.f32 %v206, %v350
  %v352 = vpop.f32.mrf.mxu0
  %v353 = vadd.f32 %v208, %v352
  %354 = vmatmul.bf16.gmra.mxu0 %v270
  %v355 = vpop.f32.mrf.mxu0
  %v356 = vadd.f32 %v211, %v355
  %v357 = vpop.f32.mrf.mxu0
  %v358 = vadd.f32 %v213, %v357
  %359 = vmatmul.bf16.gmra.mxu0 %v271
  %v360 = vpop.f32.mrf.mxu0
  %v361 = vadd.f32 %v216, %v360
  %v362 = vpop.f32.mrf.mxu0
  %v363 = vadd.f32 %v218, %v362
  %364 = vmatmul.bf16.gmra.mxu0 %v272
  %v365 = vpop.f32.mrf.mxu0
  %v366 = vadd.f32 %v221, %v365
  %v367 = vpop.f32.mrf.mxu0
  %v368 = vadd.f32 %v223, %v367
  %369 = vmatmul.bf16.gmra.mxu0 %v273
  %v370 = vpop.f32.mrf.mxu0
  %v371 = vadd.f32 %v226, %v370
  %v372 = vpop.f32.mrf.mxu0
  %v373 = vadd.f32 %v228, %v372
  %374 = vmatmul.bf16.gmra.mxu0 %v274
  %v375 = vpop.f32.mrf.mxu0
  %v376 = vadd.f32 %v231, %v375
  %v377 = vpop.f32.mrf.mxu0
  %v378 = vadd.f32 %v233, %v377
  %379 = vdwg.mxu0
  %v380 = vld [vmem:[%s4] sm:$0x1]
  %v382 = vperm.slane %v380, 0
  %v384 = vadd.f32 %v341, %v382
  %v385 = vadd.f32 %v343, %v382
  %v386 = vadd.f32 %v346, %v382
  %v387 = vadd.f32 %v348, %v382
  %v388 = vadd.f32 %v351, %v382
  %v389 = vadd.f32 %v353, %v382
  %v390 = vadd.f32 %v356, %v382
  %v391 = vadd.f32 %v358, %v382
  %v392 = vadd.f32 %v361, %v382
  %v393 = vadd.f32 %v363, %v382
  %v394 = vadd.f32 %v366, %v382
  %v395 = vadd.f32 %v368, %v382
  %v396 = vadd.f32 %v371, %v382
  %v397 = vadd.f32 %v373, %v382
  %v398 = vadd.f32 %v376, %v382
  %v399 = vadd.f32 %v378, %v382
  %v400 = vmax.f32 %v384, 0.0
  %v401 = vmax.f32 %v385, 0.0
  %v402 = vmax.f32 %v386, 0.0
  %v403 = vmax.f32 %v387, 0.0
  %v404 = vmax.f32 %v388, 0.0
  %v405 = vmax.f32 %v389, 0.0
  %v406 = vmax.f32 %v390, 0.0
  %v407 = vmax.f32 %v391, 0.0
  %v408 = vmax.f32 %v392, 0.0
  %v409 = vmax.f32 %v393, 0.0
  %v410 = vmax.f32 %v394, 0.0
  %v411 = vmax.f32 %v395, 0.0
  %v412 = vmax.f32 %v396, 0.0
  %v413 = vmax.f32 %v397, 0.0
  %v414 = vmax.f32 %v398, 0.0
  %v415 = vmax.f32 %v399, 0.0
  %v416 = vpack.c.bf16 %v401, %v400
  %v417 = vpack.c.bf16 %v403, %v402
  %v418 = vpack.c.bf16 %v405, %v404
  %v419 = vpack.c.bf16 %v407, %v406
  %v420 = vpack.c.bf16 %v409, %v408
  %v421 = vpack.c.bf16 %v411, %v410
  %v422 = vpack.c.bf16 %v413, %v412
  %v423 = vpack.c.bf16 %v415, %v414
  %v424 = vld [vmem:[%s5] sm:$0xf]
  %v425 = vld [vmem:[%s5 + $0x4] sm:$0xf]
  %v426 = vld [vmem:[%s5 + $0x8] sm:$0xf]
  %v427 = vld [vmem:[%s5 + $0xc] sm:$0xf]
  %v428 = vld [vmem:[%s5 + $0x10] sm:$0xf]
  %v429 = vld [vmem:[%s5 + $0x14] sm:$0xf]
  %v430 = vld [vmem:[%s5 + $0x18] sm:$0xf]
  %v431 = vld [vmem:[%s5 + $0x1c] sm:$0xf]
  %v432 = vld [vmem:[%s5 + $0x20] sm:$0xf]
  %v433 = vld [vmem:[%s5 + $0x24] sm:$0xf]
  %v434 = vld [vmem:[%s5 + $0x28] sm:$0xf]
  %v435 = vld [vmem:[%s5 + $0x2c] sm:$0xf]
  %v436 = vld [vmem:[%s5 + $0x30] sm:$0xf]
  %v437 = vld [vmem:[%s5 + $0x34] sm:$0xf]
  %v438 = vld [vmem:[%s5 + $0x38] sm:$0xf]
  %v439 = vld [vmem:[%s5 + $0x3c] sm:$0xf]
  %v440 = vld [vmem:[%s6] sm:$0x1]
  %v442 = vperm.slane %v440, 0
  %v460 = vunpack.c.l.b16 %v424
  %v461 = vunpack.c.l.b16 %v425
  %v462 = vunpack.c.l.b16 %v426
  %v463 = vunpack.c.l.b16 %v427
  %v464 = vunpack.c.l.b16 %v428
  %v465 = vunpack.c.l.b16 %v429
  %v466 = vunpack.c.l.b16 %v430
  %v467 = vunpack.c.l.b16 %v431
  %v468 = vunpack.c.l.b16 %v432
  %v469 = vunpack.c.l.b16 %v433
  %v470 = vunpack.c.l.b16 %v434
  %v471 = vunpack.c.l.b16 %v435
  %v472 = vunpack.c.l.b16 %v436
  %v473 = vunpack.c.l.b16 %v437
  %v474 = vunpack.c.l.b16 %v438
  %v475 = vunpack.c.l.b16 %v439
  %v476 = vpack.c.b16 %v461, %v460
  %v477 = vpack.c.b16 %v463, %v462
  %v478 = vpack.c.b16 %v465, %v464
  %v479 = vpack.c.b16 %v467, %v466
  %v480 = vpack.c.b16 %v469, %v468
  %v481 = vpack.c.b16 %v471, %v470
  %v482 = vpack.c.b16 %v473, %v472
  %v483 = vpack.c.b16 %v475, %v474
  %492 = vmatpush.bf16.msra.mxu0 %v483
  %493 = vmatpush.bf16.msra.mxu0 %v482
  %494 = vmatpush.bf16.msra.mxu0 %v481
  %495 = vmatpush.bf16.msra.mxu0 %v480
  %496 = vmatpush.bf16.msra.mxu0 %v479
  %497 = vmatpush.bf16.msra.mxu0 %v478
  %498 = vmatpush.bf16.msra.mxu0 %v477
  %499 = vmatpush.bf16.msra.mxu0 %v476
  %500 = vmatmul.bf16.gmra.mxu0 %v416
  %v501 = vpop.f32.mrf.mxu0
  %v502 = vadd.f32 %v442, %v501
  %v503 = vpop.f32.mrf.mxu0
  %v504 = vadd.f32 %v442, %v503
  %505 = vmatmul.bf16.gmra.mxu0 %v417
  %v506 = vpop.f32.mrf.mxu0
  %v507 = vadd.f32 %v442, %v506
  %v508 = vpop.f32.mrf.mxu0
  %v509 = vadd.f32 %v442, %v508
  %510 = vmatmul.bf16.gmra.mxu0 %v418
  %v511 = vpop.f32.mrf.mxu0
  %v512 = vadd.f32 %v442, %v511
  %v513 = vpop.f32.mrf.mxu0
  %v514 = vadd.f32 %v442, %v513
  %515 = vmatmul.bf16.gmra.mxu0 %v419
  %v516 = vpop.f32.mrf.mxu0
  %v517 = vadd.f32 %v442, %v516
  %v518 = vpop.f32.mrf.mxu0
  %v519 = vadd.f32 %v442, %v518
  %520 = vmatmul.bf16.gmra.mxu0 %v420
  %v521 = vpop.f32.mrf.mxu0
  %v522 = vadd.f32 %v442, %v521
  %v523 = vpop.f32.mrf.mxu0
  %v524 = vadd.f32 %v442, %v523
  %525 = vmatmul.bf16.gmra.mxu0 %v421
  %v526 = vpop.f32.mrf.mxu0
  %v527 = vadd.f32 %v442, %v526
  %v528 = vpop.f32.mrf.mxu0
  %v529 = vadd.f32 %v442, %v528
  %530 = vmatmul.bf16.gmra.mxu0 %v422
  %v531 = vpop.f32.mrf.mxu0
  %v532 = vadd.f32 %v442, %v531
  %v533 = vpop.f32.mrf.mxu0
  %v534 = vadd.f32 %v442, %v533
  %535 = vmatmul.bf16.gmra.mxu0 %v423
  %v536 = vpop.f32.mrf.mxu0
  %v537 = vadd.f32 %v442, %v536
  %v538 = vpop.f32.mrf.mxu0
  %v539 = vadd.f32 %v442, %v538
  %540 = vdwg.mxu0
  %v541 = vpack.c.bf16 %v502, %v502
  %v542 = vpack.c.bf16 %v504, %v504
  %v543 = vpack.c.bf16 %v507, %v507
  %v544 = vpack.c.bf16 %v509, %v509
  %v545 = vpack.c.bf16 %v512, %v512
  %v546 = vpack.c.bf16 %v514, %v514
  %v547 = vpack.c.bf16 %v517, %v517
  %v548 = vpack.c.bf16 %v519, %v519
  %v549 = vpack.c.bf16 %v522, %v522
  %v550 = vpack.c.bf16 %v524, %v524
  %v551 = vpack.c.bf16 %v527, %v527
  %v552 = vpack.c.bf16 %v529, %v529
  %v553 = vpack.c.bf16 %v532, %v532
  %v554 = vpack.c.bf16 %v534, %v534
  %v555 = vpack.c.bf16 %v537, %v537
  %v556 = vpack.c.bf16 %v539, %v539
  %557 = vst [vmem:[%s7] sm:$0xf] %v541
  %558 = vst [vmem:[%s7 + $0x4] sm:$0xf] %v542
  %559 = vst [vmem:[%s7 + $0x8] sm:$0xf] %v543
  %560 = vst [vmem:[%s7 + $0xc] sm:$0xf] %v544
  %561 = vst [vmem:[%s7 + $0x10] sm:$0xf] %v545
  %562 = vst [vmem:[%s7 + $0x14] sm:$0xf] %v546
  %563 = vst [vmem:[%s7 + $0x18] sm:$0xf] %v547
  %564 = vst [vmem:[%s7 + $0x1c] sm:$0xf] %v548
  %565 = vst [vmem:[%s7 + $0x20] sm:$0xf] %v549
  %566 = vst [vmem:[%s7 + $0x24] sm:$0xf] %v550
  %567 = vst [vmem:[%s7 + $0x28] sm:$0xf] %v551
  %568 = vst [vmem:[%s7 + $0x2c] sm:$0xf] %v552
  %569 = vst [vmem:[%s7 + $0x30] sm:$0xf] %v553
  %570 = vst [vmem:[%s7 + $0x34] sm:$0xf] %v554
  %571 = vst [vmem:[%s7 + $0x38] sm:$0xf] %v555
  %572 = vst [vmem:[%s7 + $0x3c] sm:$0xf] %v556
  // Predicated region
  $region30: #{model_forward.9} parent=0 // pred_check
    _
  $region31: #{model_forward.9} parent=0 // pred_check_branch
    %574 = sbr.rel (0) target = $region33
  $region32: #{model_forward.9} parent=0 // pred_region
    _
  $region33: #{model_forward.9} parent=0 // pred_fallthru
    _
  // Predicated region
  $region34: #{model_forward.9} parent=0 // pred_check
    _
  $region35: #{model_forward.9} parent=0 // pred_check_branch
    %576 = sbr.rel (0) target = $region37
  $region36: #{model_forward.9} parent=0 // pred_region
    _
  $region37: #{model_forward.9} parent=0 // pred_fallthru
    _

</llo_original>
